<compile_context>
chip_gen: v5e
topology: v5e:2x2
jax: 0.10.0
libtpu: 0.0.40
codegen_flags: <defaults>
</compile_context>

<pallas_src>
import functools

import numpy as np
import jax
import jax.numpy as jnp
from jax.experimental import pallas as pl

IMAGE_SIZE = 16
SIMPLE_NET_N_LEVELS = 3
FEATURE_CHANNELS = [16, 32, 64]   # per-level num_chs (synthetic feature_info)
KH = KW = 3
STRIDE = 2
PAD = 1
LANE = 128                        # pad all channel dims to 128 lanes


# ----------------------------------------------------------------------------
# Fused Pallas kernel: 3x (conv3x3 stride2 + bias + ReLU), VMEM-resident
# ----------------------------------------------------------------------------
def fused_pyramid_kernel(p0_ref, w0_ref, b0_ref,
                         g1_ref, w1_ref, b1_ref,
                         g2_ref, w2_ref, b2_ref,
                         f0_ref, f1_ref, f2_ref):
    # p0_ref: [M0, 27]  bf16  level-1 im2col patches
    # w0_ref: [27, 128] bf16  level-1 weight, Cout zero-padded to 128 lanes
    # gX_ref: [9, M, P] bf16  per-tap 0/1 gather matrices (in-kernel im2col)
    # wX_ref: [9, 128, 128] bf16  per-tap [Cin, Cout] weights, zero-padded
    # bX_ref: [1, 128]  f32   zero-padded bias
    # fX_ref: [M, 128]  f32   lane-dense feature outputs

    def conv_stage(x_bf16, g_ref, w_ref, b_ref, out_shape):
        acc = jnp.zeros(out_shape, jnp.float32)
        for t in range(KH * KW):
            # im2col tap via 0/1 selection matmul (rows of x or exact zeros,
            # so the f32->bf16 recast below is lossless), then tap matmul.
            tap = jnp.dot(g_ref[t], x_bf16, preferred_element_type=jnp.float32)
            acc = acc + jnp.dot(tap.astype(jnp.bfloat16), w_ref[t],
                                preferred_element_type=jnp.float32)
        return jnp.maximum(acc + b_ref[...], 0.0)

    # Stage 1: patches @ W0 fused with bias + ReLU (f32 epilogue on VPU).
    acc0 = jnp.dot(p0_ref[...], w0_ref[...], preferred_element_type=jnp.float32)
    y0 = jnp.maximum(acc0 + b0_ref[...], 0.0)
    f0_ref[...] = y0

    # Stage 2 (input kept on-chip, bf16 operands for the MXU).
    y1 = conv_stage(y0.astype(jnp.bfloat16), g1_ref, w1_ref, b1_ref, f1_ref.shape)
    f1_ref[...] = y1

    # Stage 3.
    y2 = conv_stage(y1.astype(jnp.bfloat16), g2_ref, w2_ref, b2_ref, f2_ref.shape)
    f2_ref[...] = y2


# ----------------------------------------------------------------------------
# Glue: im2col for stage 1 (XLA, under jit), one-time parameter prep
# ----------------------------------------------------------------------------
def im2col_nhwc(x, kh, kw, stride, pad):
    """x: [N, H, W, C] -> (patches [N*Ho*Wo, kh*kw*C], Ho, Wo). Tap order (i,j,C)."""
    x = jnp.pad(x, ((0, 0), (pad, pad), (pad, pad), (0, 0)))
    N, Hp, Wp, C = x.shape
    Ho = (Hp - kh) // stride + 1
    Wo = (Wp - kw) // stride + 1
    taps = []
    for i in range(kh):
        for j in range(kw):
            taps.append(
                x[:, i:i + stride * Ho:stride, j:j + stride * Wo:stride, :])
    patches = jnp.concatenate(taps, axis=-1)          # [N, Ho, Wo, kh*kw*C]
    return patches.reshape(N * Ho * Wo, kh * kw * C), Ho, Wo


def init_params(key, n_levels):
    """Deterministic He-style init. Conv weights in PyTorch layout [Cout, Cin, kh, kw]."""
    params = []
    cin = 3
    for lvl in range(n_levels):
        cout = FEATURE_CHANNELS[lvl]
        key, wk, bk = jax.random.split(key, 3)
        fan_in = cin * KH * KW
        w = jax.random.normal(wk, (cout, cin, KH, KW), jnp.float32) * (
            2.0 / fan_in) ** 0.5
        b = 0.01 * jax.random.normal(bk, (cout,), jnp.float32)
        params.append((w, b))
        cin = cout
    return params


def _gather_mats(s_in, batch):
    """0/1 matrices realizing 3x3 / stride-2 / pad-1 im2col as a matmul, per tap.

    G[t, m, p] = 1 iff tap t of output pixel m reads input pixel p (rows that
    fall in the zero-padding region are all-zero, i.e. contribute exactly 0).
    Row/col ordering is row-major (n, h, w), matching the kernel's activation
    layout.
    """
    s_out = s_in // STRIDE
    g = np.zeros((KH * KW, s_out * s_out, s_in * s_in), np.float32)
    for i in range(KH):
        for j in range(KW):
            for ho in range(s_out):
                for wo in range(s_out):
                    h = STRIDE * ho + i - PAD
                    w = STRIDE * wo + j - PAD
                    if 0 <= h < s_in and 0 <= w < s_in:
                        g[i * KW + j, ho * s_out + wo, h * s_in + w] = 1.0
    eye = np.eye(batch, dtype=np.float32)
    g = np.stack([np.kron(eye, g[t]) for t in range(KH * KW)])  # block-diag per batch
    return jnp.asarray(g, dtype=jnp.bfloat16)                   # 0/1 exact in bf16


def prep_params(params, batch):
    """One-time layout prep (hoisted out of the forward hot path)."""
    (w0, b0), (w1, b1), (w2, b2) = params

    def l1_weight(w):
        cout, cin = w.shape[0], w.shape[1]
        # [Cout,Cin,kh,kw] -> [kh,kw,Cin,Cout] -> [kh*kw*Cin, Cout] -> pad lanes
        m = jnp.transpose(w, (2, 3, 1, 0)).reshape(KH * KW * cin, cout)
        return jnp.pad(m, ((0, 0), (0, LANE - cout))).astype(jnp.bfloat16)

    def tap_weights(w):
        cout, cin = w.shape[0], w.shape[1]
        # per-tap [Cin, Cout], zero-padded to [128, 128], stacked over 9 taps
        t = jnp.transpose(w, (2, 3, 1, 0)).reshape(KH * KW, cin, cout)
        return jnp.pad(t, ((0, 0), (0, LANE - cin), (0, LANE - cout))
                       ).astype(jnp.bfloat16)

    def pad_bias(b):
        return jnp.pad(b, (0, LANE - b.shape[0])).reshape(1, LANE).astype(jnp.float32)

    return dict(
        w0=l1_weight(w0), b0=pad_bias(b0),
        g1=_gather_mats(IMAGE_SIZE // 2, batch), w1=tap_weights(w1), b1=pad_bias(b1),
        g2=_gather_mats(IMAGE_SIZE // 4, batch), w2=tap_weights(w2), b2=pad_bias(b2),
    )


# ----------------------------------------------------------------------------
# Forward (jitted): mirrors SimpleNet.forward, returns first n_levels features
# ----------------------------------------------------------------------------
@functools.partial(jax.jit, static_argnums=(2,))
def simple_net_forward(x_nchw, prepped, n_levels):
    if x_nchw.shape[-1] != IMAGE_SIZE or x_nchw.shape[-2] != IMAGE_SIZE:
        raise ValueError(
            f"Input image size must be {IMAGE_SIZE}x{IMAGE_SIZE}, "
            f"but got {x_nchw.shape[-2]}x{x_nchw.shape[-1]}")
    n = x_nchw.shape[0]
    x = jnp.transpose(x_nchw, (0, 2, 3, 1))                     # NCHW -> NHWC
    patches0, _, _ = im2col_nhwc(x, KH, KW, STRIDE, PAD)        # [N*64, 27]
    patches0 = patches0.astype(jnp.bfloat16)

    m0, m1, m2 = n * 64, n * 16, n * 4                          # 8x8, 4x4, 2x2 grids

    def full(shape):
        return pl.BlockSpec(shape, lambda: (0,) * len(shape))

    f0, f1, f2 = pl.pallas_call(
        fused_pyramid_kernel,
        out_shape=(jax.ShapeDtypeStruct((m0, LANE), jnp.float32),
                   jax.ShapeDtypeStruct((m1, LANE), jnp.float32),
                   jax.ShapeDtypeStruct((m2, LANE), jnp.float32)),
        in_specs=[full(patches0.shape),
                  full(prepped["w0"].shape), full(prepped["b0"].shape),
                  full(prepped["g1"].shape),
                  full(prepped["w1"].shape), full(prepped["b1"].shape),
                  full(prepped["g2"].shape),
                  full(prepped["w2"].shape), full(prepped["b2"].shape)],
        out_specs=(full((m0, LANE)), full((m1, LANE)), full((m2, LANE))),
    )(patches0,
      prepped["w0"], prepped["b0"],
      prepped["g1"], prepped["w1"], prepped["b1"],
      prepped["g2"], prepped["w2"], prepped["b2"])

    c0, c1, c2 = FEATURE_CHANNELS
    feats = [
        jnp.transpose(f0[:, :c0].reshape(n, 8, 8, c0), (0, 3, 1, 2)),
        jnp.transpose(f1[:, :c1].reshape(n, 4, 4, c1), (0, 3, 1, 2)),
        jnp.transpose(f2[:, :c2].reshape(n, 2, 2, c2), (0, 3, 1, 2)),
    ]
    return feats[:n_levels]


def reference_forward(x_nchw, params, n_levels):
    """Pure-JAX f32 reference (lax conv) for correctness checking."""
    feats = []
    x = x_nchw
    for (w, b) in params[:n_levels]:
        y = jax.lax.conv_general_dilated(
            x, w, window_strides=(STRIDE, STRIDE),
            padding=((PAD, PAD), (PAD, PAD)),
            dimension_numbers=("NCHW", "OIHW", "NCHW"))
        y = jnp.maximum(y + b.reshape(1, -1, 1, 1), 0.0)
        feats.append(y)
        x = y
    return feats


if __name__ == "__main__":
    key = jax.random.PRNGKey(0)
    pkey, xkey = jax.random.split(key)
    params = init_params(pkey, SIMPLE_NET_N_LEVELS)
    # batch=2, channels=3, spatial=IMAGE_SIZE (16)
    x = jax.random.normal(xkey, (2, 3, IMAGE_SIZE, IMAGE_SIZE), jnp.float32)
    prepped = prep_params(params, batch=x.shape[0])

    feats = simple_net_forward(x, prepped, SIMPLE_NET_N_LEVELS)
    feats = [jax.block_until_ready(f) for f in feats]

    # sanity: shapes follow stride-2 pyramid [2,16,8,8], [2,32,4,4], [2,64,2,2]
    expected = [(2, 16, 8, 8), (2, 32, 4, 4), (2, 64, 2, 2)]
    assert [tuple(f.shape) for f in feats] == expected, \
        f"unexpected shapes {[f.shape for f in feats]}"
    assert all(bool(jnp.all(jnp.isfinite(f))) for f in feats)
    assert all(bool(jnp.all(f >= 0.0)) for f in feats)           # ReLU output

    # numerical check vs. pure-JAX f32 reference (bf16 MXU operands -> loose tol)
    ref = reference_forward(x, params, SIMPLE_NET_N_LEVELS)
    for lvl, (f, r) in enumerate(zip(feats, ref)):
        err = float(jnp.max(jnp.abs(f - r)))
        assert jnp.allclose(f, r, rtol=1e-1, atol=1e-1), \
            f"level {lvl} mismatch, max abs err {err}"

    print("KERNEL_OK")
</pallas_src>

<mosaic_0001>
module attributes {stable_mosaic.version = 11 : i64} {
  func.func @fused_pyramid_kernel(%arg0: memref<128x27xbf16, #tpu.memory_space<vmem>>, %arg1: memref<27x128xbf16, #tpu.memory_space<vmem>>, %arg2: memref<1x128xf32, #tpu.memory_space<vmem>>, %arg3: memref<9x32x128xbf16, #tpu.memory_space<vmem>>, %arg4: memref<9x128x128xbf16, #tpu.memory_space<vmem>>, %arg5: memref<1x128xf32, #tpu.memory_space<vmem>>, %arg6: memref<9x8x32xbf16, #tpu.memory_space<vmem>>, %arg7: memref<9x128x128xbf16, #tpu.memory_space<vmem>>, %arg8: memref<1x128xf32, #tpu.memory_space<vmem>>, %arg9: memref<128x128xf32, #tpu.memory_space<vmem>>, %arg10: memref<32x128xf32, #tpu.memory_space<vmem>>, %arg11: memref<8x128xf32, #tpu.memory_space<vmem>>) attributes {dimension_semantics = [], scalar_prefetch = 0 : i64, scratch_operands = 0 : i64, tpu.core_type = #tpu.core_type<tc>} {
    %c0 = arith.constant 0 : index
    %c0_0 = arith.constant 0 : index
    %0 = vector.load %arg0[%c0, %c0_0] : memref<128x27xbf16, #tpu.memory_space<vmem>>, vector<128x27xbf16>
    %c0_1 = arith.constant 0 : index
    %c0_2 = arith.constant 0 : index
    %1 = vector.load %arg1[%c0_1, %c0_2] : memref<27x128xbf16, #tpu.memory_space<vmem>>, vector<27x128xbf16>
    %cst = arith.constant dense<0.000000e+00> : vector<128x128xf32>
    %2 = tpu.matmul %0, %1, %cst {dimension_numbers = #tpu.dot_dimension_numbers<[1], [0], [0], [1], [0, 0, 1, 1], [], []>} : vector<128x27xbf16>, vector<27x128xbf16>, vector<128x128xf32> -> vector<128x128xf32>
    %c0_3 = arith.constant 0 : index
    %c0_4 = arith.constant 0 : index
    %3 = vector.load %arg2[%c0_3, %c0_4] : memref<1x128xf32, #tpu.memory_space<vmem>>, vector<1x128xf32>
    %4 = vector.broadcast %3 : vector<1x128xf32> to vector<128x128xf32>
    %5 = arith.addf %2, %4 : vector<128x128xf32>
    %cst_5 = arith.constant 0.000000e+00 : f32
    %6 = vector.broadcast %cst_5 : f32 to vector<128x128xf32>
    %7 = arith.maximumf %5, %6 : vector<128x128xf32>
    %c0_6 = arith.constant 0 : index
    %c0_7 = arith.constant 0 : index
    %8 = vector.load %arg9[%c0_6, %c0_7] : memref<128x128xf32, #tpu.memory_space<vmem>>, vector<128x128xf32>
    tpu.vector_store %arg9[%c0_6, %c0_7], %7 {strides = array<i32>} : memref<128x128xf32, #tpu.memory_space<vmem>>, vector<128x128xf32>,
    %9 = arith.truncf %7 : vector<128x128xf32> to vector<128x128xbf16>
    %cst_8 = arith.constant 0.000000e+00 : f32
    %10 = vector.broadcast %cst_8 : f32 to vector<32x128xf32>
    %c0_9 = arith.constant 0 : index
    %c0_10 = arith.constant 0 : index
    %c0_11 = arith.constant 0 : index
    %11 = vector.load %arg3[%c0_9, %c0_10, %c0_11] : memref<9x32x128xbf16, #tpu.memory_space<vmem>>, vector<1x32x128xbf16>
    %12 = vector.shape_cast %11 : vector<1x32x128xbf16> to vector<32x128xbf16>
    %cst_12 = arith.constant dense<0.000000e+00> : vector<32x128xf32>
    %13 = tpu.matmul %12, %9, %cst_12 {dimension_numbers = #tpu.dot_dimension_numbers<[1], [0], [0], [1], [0, 0, 1, 1], [], []>} : vector<32x128xbf16>, vector<128x128xbf16>, vector<32x128xf32> -> vector<32x128xf32>
    %14 = arith.truncf %13 : vector<32x128xf32> to vector<32x128xbf16>
    %c0_13 = arith.constant 0 : index
    %c0_14 = arith.constant 0 : index
    %c0_15 = arith.constant 0 : index
    %15 = vector.load %arg4[%c0_13, %c0_14, %c0_15] : memref<9x128x128xbf16, #tpu.memory_space<vmem>>, vector<1x128x128xbf16>
    %16 = vector.shape_cast %15 : vector<1x128x128xbf16> to vector<128x128xbf16>
    %cst_16 = arith.constant dense<0.000000e+00> : vector<32x128xf32>
    %17 = tpu.matmul %14, %16, %cst_16 {dimension_numbers = #tpu.dot_dimension_numbers<[1], [0], [0], [1], [0, 0, 1, 1], [], []>} : vector<32x128xbf16>, vector<128x128xbf16>, vector<32x128xf32> -> vector<32x128xf32>
    %18 = arith.addf %10, %17 : vector<32x128xf32>
    %c1 = arith.constant 1 : index
    %c0_17 = arith.constant 0 : index
    %c0_18 = arith.constant 0 : index
    %19 = vector.load %arg3[%c1, %c0_17, %c0_18] : memref<9x32x128xbf16, #tpu.memory_space<vmem>>, vector<1x32x128xbf16>
    %20 = vector.shape_cast %19 : vector<1x32x128xbf16> to vector<32x128xbf16>
    %cst_19 = arith.constant dense<0.000000e+00> : vector<32x128xf32>
    %21 = tpu.matmul %20, %9, %cst_19 {dimension_numbers = #tpu.dot_dimension_numbers<[1], [0], [0], [1], [0, 0, 1, 1], [], []>} : vector<32x128xbf16>, vector<128x128xbf16>, vector<32x128xf32> -> vector<32x128xf32>
    %22 = arith.truncf %21 : vector<32x128xf32> to vector<32x128xbf16>
    %c1_20 = arith.constant 1 : index
    %c0_21 = arith.constant 0 : index
    %c0_22 = arith.constant 0 : index
    %23 = vector.load %arg4[%c1_20, %c0_21, %c0_22] : memref<9x128x128xbf16, #tpu.memory_space<vmem>>, vector<1x128x128xbf16>
    %24 = vector.shape_cast %23 : vector<1x128x128xbf16> to vector<128x128xbf16>
    %cst_23 = arith.constant dense<0.000000e+00> : vector<32x128xf32>
    %25 = tpu.matmul %22, %24, %cst_23 {dimension_numbers = #tpu.dot_dimension_numbers<[1], [0], [0], [1], [0, 0, 1, 1], [], []>} : vector<32x128xbf16>, vector<128x128xbf16>, vector<32x128xf32> -> vector<32x128xf32>
    %26 = arith.addf %18, %25 : vector<32x128xf32>
    %c2 = arith.constant 2 : index
    %c0_24 = arith.constant 0 : index
    %c0_25 = arith.constant 0 : index
    %27 = vector.load %arg3[%c2, %c0_24, %c0_25] : memref<9x32x128xbf16, #tpu.memory_space<vmem>>, vector<1x32x128xbf16>
    %28 = vector.shape_cast %27 : vector<1x32x128xbf16> to vector<32x128xbf16>
    %cst_26 = arith.constant dense<0.000000e+00> : vector<32x128xf32>
    %29 = tpu.matmul %28, %9, %cst_26 {dimension_numbers = #tpu.dot_dimension_numbers<[1], [0], [0], [1], [0, 0, 1, 1], [], []>} : vector<32x128xbf16>, vector<128x128xbf16>, vector<32x128xf32> -> vector<32x128xf32>
    %30 = arith.truncf %29 : vector<32x128xf32> to vector<32x128xbf16>
    %c2_27 = arith.constant 2 : index
    %c0_28 = arith.constant 0 : index
    %c0_29 = arith.constant 0 : index
    %31 = vector.load %arg4[%c2_27, %c0_28, %c0_29] : memref<9x128x128xbf16, #tpu.memory_space<vmem>>, vector<1x128x128xbf16>
    %32 = vector.shape_cast %31 : vector<1x128x128xbf16> to vector<128x128xbf16>
    %cst_30 = arith.constant dense<0.000000e+00> : vector<32x128xf32>
    %33 = tpu.matmul %30, %32, %cst_30 {dimension_numbers = #tpu.dot_dimension_numbers<[1], [0], [0], [1], [0, 0, 1, 1], [], []>} : vector<32x128xbf16>, vector<128x128xbf16>, vector<32x128xf32> -> vector<32x128xf32>
    %34 = arith.addf %26, %33 : vector<32x128xf32>
    %c3 = arith.constant 3 : index
    %c0_31 = arith.constant 0 : index
    %c0_32 = arith.constant 0 : index
    %35 = vector.load %arg3[%c3, %c0_31, %c0_32] : memref<9x32x128xbf16, #tpu.memory_space<vmem>>, vector<1x32x128xbf16>
    %36 = vector.shape_cast %35 : vector<1x32x128xbf16> to vector<32x128xbf16>
    %cst_33 = arith.constant dense<0.000000e+00> : vector<32x128xf32>
    %37 = tpu.matmul %36, %9, %cst_33 {dimension_numbers = #tpu.dot_dimension_numbers<[1], [0], [0], [1], [0, 0, 1, 1], [], []>} : vector<32x128xbf16>, vector<128x128xbf16>, vector<32x128xf32> -> vector<32x128xf32>
    %38 = arith.truncf %37 : vector<32x128xf32> to vector<32x128xbf16>
    %c3_34 = arith.constant 3 : index
    %c0_35 = arith.constant 0 : index
    %c0_36 = arith.constant 0 : index
    %39 = vector.load %arg4[%c3_34, %c0_35, %c0_36] : memref<9x128x128xbf16, #tpu.memory_space<vmem>>, vector<1x128x128xbf16>
    %40 = vector.shape_cast %39 : vector<1x128x128xbf16> to vector<128x128xbf16>
    %cst_37 = arith.constant dense<0.000000e+00> : vector<32x128xf32>
    %41 = tpu.matmul %38, %40, %cst_37 {dimension_numbers = #tpu.dot_dimension_numbers<[1], [0], [0], [1], [0, 0, 1, 1], [], []>} : vector<32x128xbf16>, vector<128x128xbf16>, vector<32x128xf32> -> vector<32x128xf32>
    %42 = arith.addf %34, %41 : vector<32x128xf32>
    %c4 = arith.constant 4 : index
    %c0_38 = arith.constant 0 : index
    %c0_39 = arith.constant 0 : index
    %43 = vector.load %arg3[%c4, %c0_38, %c0_39] : memref<9x32x128xbf16, #tpu.memory_space<vmem>>, vector<1x32x128xbf16>
    %44 = vector.shape_cast %43 : vector<1x32x128xbf16> to vector<32x128xbf16>
    %cst_40 = arith.constant dense<0.000000e+00> : vector<32x128xf32>
    %45 = tpu.matmul %44, %9, %cst_40 {dimension_numbers = #tpu.dot_dimension_numbers<[1], [0], [0], [1], [0, 0, 1, 1], [], []>} : vector<32x128xbf16>, vector<128x128xbf16>, vector<32x128xf32> -> vector<32x128xf32>
    %46 = arith.truncf %45 : vector<32x128xf32> to vector<32x128xbf16>
    %c4_41 = arith.constant 4 : index
    %c0_42 = arith.constant 0 : index
    %c0_43 = arith.constant 0 : index
    %47 = vector.load %arg4[%c4_41, %c0_42, %c0_43] : memref<9x128x128xbf16, #tpu.memory_space<vmem>>, vector<1x128x128xbf16>
    %48 = vector.shape_cast %47 : vector<1x128x128xbf16> to vector<128x128xbf16>
    %cst_44 = arith.constant dense<0.000000e+00> : vector<32x128xf32>
    %49 = tpu.matmul %46, %48, %cst_44 {dimension_numbers = #tpu.dot_dimension_numbers<[1], [0], [0], [1], [0, 0, 1, 1], [], []>} : vector<32x128xbf16>, vector<128x128xbf16>, vector<32x128xf32> -> vector<32x128xf32>
    %50 = arith.addf %42, %49 : vector<32x128xf32>
    %c5 = arith.constant 5 : index
    %c0_45 = arith.constant 0 : index
    %c0_46 = arith.constant 0 : index
    %51 = vector.load %arg3[%c5, %c0_45, %c0_46] : memref<9x32x128xbf16, #tpu.memory_space<vmem>>, vector<1x32x128xbf16>
    %52 = vector.shape_cast %51 : vector<1x32x128xbf16> to vector<32x128xbf16>
    %cst_47 = arith.constant dense<0.000000e+00> : vector<32x128xf32>
    %53 = tpu.matmul %52, %9, %cst_47 {dimension_numbers = #tpu.dot_dimension_numbers<[1], [0], [0], [1], [0, 0, 1, 1], [], []>} : vector<32x128xbf16>, vector<128x128xbf16>, vector<32x128xf32> -> vector<32x128xf32>
    %54 = arith.truncf %53 : vector<32x128xf32> to vector<32x128xbf16>
    %c5_48 = arith.constant 5 : index
    %c0_49 = arith.constant 0 : index
    %c0_50 = arith.constant 0 : index
    %55 = vector.load %arg4[%c5_48, %c0_49, %c0_50] : memref<9x128x128xbf16, #tpu.memory_space<vmem>>, vector<1x128x128xbf16>
    %56 = vector.shape_cast %55 : vector<1x128x128xbf16> to vector<128x128xbf16>
    %cst_51 = arith.constant dense<0.000000e+00> : vector<32x128xf32>
    %57 = tpu.matmul %54, %56, %cst_51 {dimension_numbers = #tpu.dot_dimension_numbers<[1], [0], [0], [1], [0, 0, 1, 1], [], []>} : vector<32x128xbf16>, vector<128x128xbf16>, vector<32x128xf32> -> vector<32x128xf32>
    %58 = arith.addf %50, %57 : vector<32x128xf32>
    %c6 = arith.constant 6 : index
    %c0_52 = arith.constant 0 : index
    %c0_53 = arith.constant 0 : index
    %59 = vector.load %arg3[%c6, %c0_52, %c0_53] : memref<9x32x128xbf16, #tpu.memory_space<vmem>>, vector<1x32x128xbf16>
    %60 = vector.shape_cast %59 : vector<1x32x128xbf16> to vector<32x128xbf16>
    %cst_54 = arith.constant dense<0.000000e+00> : vector<32x128xf32>
    %61 = tpu.matmul %60, %9, %cst_54 {dimension_numbers = #tpu.dot_dimension_numbers<[1], [0], [0], [1], [0, 0, 1, 1], [], []>} : vector<32x128xbf16>, vector<128x128xbf16>, vector<32x128xf32> -> vector<32x128xf32>
    %62 = arith.truncf %61 : vector<32x128xf32> to vector<32x128xbf16>
    %c6_55 = arith.constant 6 : index
    %c0_56 = arith.constant 0 : index
    %c0_57 = arith.constant 0 : index
    %63 = vector.load %arg4[%c6_55, %c0_56, %c0_57] : memref<9x128x128xbf16, #tpu.memory_space<vmem>>, vector<1x128x128xbf16>
    %64 = vector.shape_cast %63 : vector<1x128x128xbf16> to vector<128x128xbf16>
    %cst_58 = arith.constant dense<0.000000e+00> : vector<32x128xf32>
    %65 = tpu.matmul %62, %64, %cst_58 {dimension_numbers = #tpu.dot_dimension_numbers<[1], [0], [0], [1], [0, 0, 1, 1], [], []>} : vector<32x128xbf16>, vector<128x128xbf16>, vector<32x128xf32> -> vector<32x128xf32>
    %66 = arith.addf %58, %65 : vector<32x128xf32>
    %c7 = arith.constant 7 : index
    %c0_59 = arith.constant 0 : index
    %c0_60 = arith.constant 0 : index
    %67 = vector.load %arg3[%c7, %c0_59, %c0_60] : memref<9x32x128xbf16, #tpu.memory_space<vmem>>, vector<1x32x128xbf16>
    %68 = vector.shape_cast %67 : vector<1x32x128xbf16> to vector<32x128xbf16>
    %cst_61 = arith.constant dense<0.000000e+00> : vector<32x128xf32>
    %69 = tpu.matmul %68, %9, %cst_61 {dimension_numbers = #tpu.dot_dimension_numbers<[1], [0], [0], [1], [0, 0, 1, 1], [], []>} : vector<32x128xbf16>, vector<128x128xbf16>, vector<32x128xf32> -> vector<32x128xf32>
    %70 = arith.truncf %69 : vector<32x128xf32> to vector<32x128xbf16>
    %c7_62 = arith.constant 7 : index
    %c0_63 = arith.constant 0 : index
    %c0_64 = arith.constant 0 : index
    %71 = vector.load %arg4[%c7_62, %c0_63, %c0_64] : memref<9x128x128xbf16, #tpu.memory_space<vmem>>, vector<1x128x128xbf16>
    %72 = vector.shape_cast %71 : vector<1x128x128xbf16> to vector<128x128xbf16>
    %cst_65 = arith.constant dense<0.000000e+00> : vector<32x128xf32>
    %73 = tpu.matmul %70, %72, %cst_65 {dimension_numbers = #tpu.dot_dimension_numbers<[1], [0], [0], [1], [0, 0, 1, 1], [], []>} : vector<32x128xbf16>, vector<128x128xbf16>, vector<32x128xf32> -> vector<32x128xf32>
    %74 = arith.addf %66, %73 : vector<32x128xf32>
    %c8 = arith.constant 8 : index
    %c0_66 = arith.constant 0 : index
    %c0_67 = arith.constant 0 : index
    %75 = vector.load %arg3[%c8, %c0_66, %c0_67] : memref<9x32x128xbf16, #tpu.memory_space<vmem>>, vector<1x32x128xbf16>
    %76 = vector.shape_cast %75 : vector<1x32x128xbf16> to vector<32x128xbf16>
    %cst_68 = arith.constant dense<0.000000e+00> : vector<32x128xf32>
    %77 = tpu.matmul %76, %9, %cst_68 {dimension_numbers = #tpu.dot_dimension_numbers<[1], [0], [0], [1], [0, 0, 1, 1], [], []>} : vector<32x128xbf16>, vector<128x128xbf16>, vector<32x128xf32> -> vector<32x128xf32>
    %78 = arith.truncf %77 : vector<32x128xf32> to vector<32x128xbf16>
    %c8_69 = arith.constant 8 : index
    %c0_70 = arith.constant 0 : index
    %c0_71 = arith.constant 0 : index
    %79 = vector.load %arg4[%c8_69, %c0_70, %c0_71] : memref<9x128x128xbf16, #tpu.memory_space<vmem>>, vector<1x128x128xbf16>
    %80 = vector.shape_cast %79 : vector<1x128x128xbf16> to vector<128x128xbf16>
    %cst_72 = arith.constant dense<0.000000e+00> : vector<32x128xf32>
    %81 = tpu.matmul %78, %80, %cst_72 {dimension_numbers = #tpu.dot_dimension_numbers<[1], [0], [0], [1], [0, 0, 1, 1], [], []>} : vector<32x128xbf16>, vector<128x128xbf16>, vector<32x128xf32> -> vector<32x128xf32>
    %82 = arith.addf %74, %81 : vector<32x128xf32>
    %c0_73 = arith.constant 0 : index
    %c0_74 = arith.constant 0 : index
    %83 = vector.load %arg5[%c0_73, %c0_74] : memref<1x128xf32, #tpu.memory_space<vmem>>, vector<1x128xf32>
    %84 = vector.broadcast %83 : vector<1x128xf32> to vector<32x128xf32>
    %85 = arith.addf %82, %84 : vector<32x128xf32>
    %cst_75 = arith.constant 0.000000e+00 : f32
    %86 = vector.broadcast %cst_75 : f32 to vector<32x128xf32>
    %87 = arith.maximumf %85, %86 : vector<32x128xf32>
    %c0_76 = arith.constant 0 : index
    %c0_77 = arith.constant 0 : index
    %88 = vector.load %arg10[%c0_76, %c0_77] : memref<32x128xf32, #tpu.memory_space<vmem>>, vector<32x128xf32>
    tpu.vector_store %arg10[%c0_76, %c0_77], %87 {strides = array<i32>} : memref<32x128xf32, #tpu.memory_space<vmem>>, vector<32x128xf32>,
    %89 = arith.truncf %87 : vector<32x128xf32> to vector<32x128xbf16>
    %cst_78 = arith.constant 0.000000e+00 : f32
    %90 = vector.broadcast %cst_78 : f32 to vector<8x128xf32>
    %c0_79 = arith.constant 0 : index
    %c0_80 = arith.constant 0 : index
    %c0_81 = arith.constant 0 : index
    %91 = vector.load %arg6[%c0_79, %c0_80, %c0_81] : memref<9x8x32xbf16, #tpu.memory_space<vmem>>, vector<1x8x32xbf16>
    %92 = vector.shape_cast %91 : vector<1x8x32xbf16> to vector<8x32xbf16>
    %cst_82 = arith.constant dense<0.000000e+00> : vector<8x128xf32>
    %93 = tpu.matmul %92, %89, %cst_82 {dimension_numbers = #tpu.dot_dimension_numbers<[1], [0], [0], [1], [0, 0, 1, 1], [], []>} : vector<8x32xbf16>, vector<32x128xbf16>, vector<8x128xf32> -> vector<8x128xf32>
    %94 = arith.truncf %93 : vector<8x128xf32> to vector<8x128xbf16>
    %c0_83 = arith.constant 0 : index
    %c0_84 = arith.constant 0 : index
    %c0_85 = arith.constant 0 : index
    %95 = vector.load %arg7[%c0_83, %c0_84, %c0_85] : memref<9x128x128xbf16, #tpu.memory_space<vmem>>, vector<1x128x128xbf16>
    %96 = vector.shape_cast %95 : vector<1x128x128xbf16> to vector<128x128xbf16>
    %cst_86 = arith.constant dense<0.000000e+00> : vector<8x128xf32>
    %97 = tpu.matmul %94, %96, %cst_86 {dimension_numbers = #tpu.dot_dimension_numbers<[1], [0], [0], [1], [0, 0, 1, 1], [], []>} : vector<8x128xbf16>, vector<128x128xbf16>, vector<8x128xf32> -> vector<8x128xf32>
    %98 = arith.addf %90, %97 : vector<8x128xf32>
    %c1_87 = arith.constant 1 : index
    %c0_88 = arith.constant 0 : index
    %c0_89 = arith.constant 0 : index
    %99 = vector.load %arg6[%c1_87, %c0_88, %c0_89] : memref<9x8x32xbf16, #tpu.memory_space<vmem>>, vector<1x8x32xbf16>
    %100 = vector.shape_cast %99 : vector<1x8x32xbf16> to vector<8x32xbf16>
    %cst_90 = arith.constant dense<0.000000e+00> : vector<8x128xf32>
    %101 = tpu.matmul %100, %89, %cst_90 {dimension_numbers = #tpu.dot_dimension_numbers<[1], [0], [0], [1], [0, 0, 1, 1], [], []>} : vector<8x32xbf16>, vector<32x128xbf16>, vector<8x128xf32> -> vector<8x128xf32>
    %102 = arith.truncf %101 : vector<8x128xf32> to vector<8x128xbf16>
    %c1_91 = arith.constant 1 : index
    %c0_92 = arith.constant 0 : index
    %c0_93 = arith.constant 0 : index
    %103 = vector.load %arg7[%c1_91, %c0_92, %c0_93] : memref<9x128x128xbf16, #tpu.memory_space<vmem>>, vector<1x128x128xbf16>
    %104 = vector.shape_cast %103 : vector<1x128x128xbf16> to vector<128x128xbf16>
    %cst_94 = arith.constant dense<0.000000e+00> : vector<8x128xf32>
    %105 = tpu.matmul %102, %104, %cst_94 {dimension_numbers = #tpu.dot_dimension_numbers<[1], [0], [0], [1], [0, 0, 1, 1], [], []>} : vector<8x128xbf16>, vector<128x128xbf16>, vector<8x128xf32> -> vector<8x128xf32>
    %106 = arith.addf %98, %105 : vector<8x128xf32>
    %c2_95 = arith.constant 2 : index
    %c0_96 = arith.constant 0 : index
    %c0_97 = arith.constant 0 : index
    %107 = vector.load %arg6[%c2_95, %c0_96, %c0_97] : memref<9x8x32xbf16, #tpu.memory_space<vmem>>, vector<1x8x32xbf16>
    %108 = vector.shape_cast %107 : vector<1x8x32xbf16> to vector<8x32xbf16>
    %cst_98 = arith.constant dense<0.000000e+00> : vector<8x128xf32>
    %109 = tpu.matmul %108, %89, %cst_98 {dimension_numbers = #tpu.dot_dimension_numbers<[1], [0], [0], [1], [0, 0, 1, 1], [], []>} : vector<8x32xbf16>, vector<32x128xbf16>, vector<8x128xf32> -> vector<8x128xf32>
    %110 = arith.truncf %109 : vector<8x128xf32> to vector<8x128xbf16>
    %c2_99 = arith.constant 2 : index
    %c0_100 = arith.constant 0 : index
    %c0_101 = arith.constant 0 : index
    %111 = vector.load %arg7[%c2_99, %c0_100, %c0_101] : memref<9x128x128xbf16, #tpu.memory_space<vmem>>, vector<1x128x128xbf16>
    %112 = vector.shape_cast %111 : vector<1x128x128xbf16> to vector<128x128xbf16>
    %cst_102 = arith.constant dense<0.000000e+00> : vector<8x128xf32>
    %113 = tpu.matmul %110, %112, %cst_102 {dimension_numbers = #tpu.dot_dimension_numbers<[1], [0], [0], [1], [0, 0, 1, 1], [], []>} : vector<8x128xbf16>, vector<128x128xbf16>, vector<8x128xf32> -> vector<8x128xf32>
    %114 = arith.addf %106, %113 : vector<8x128xf32>
    %c3_103 = arith.constant 3 : index
    %c0_104 = arith.constant 0 : index
    %c0_105 = arith.constant 0 : index
    %115 = vector.load %arg6[%c3_103, %c0_104, %c0_105] : memref<9x8x32xbf16, #tpu.memory_space<vmem>>, vector<1x8x32xbf16>
    %116 = vector.shape_cast %115 : vector<1x8x32xbf16> to vector<8x32xbf16>
    %cst_106 = arith.constant dense<0.000000e+00> : vector<8x128xf32>
    %117 = tpu.matmul %116, %89, %cst_106 {dimension_numbers = #tpu.dot_dimension_numbers<[1], [0], [0], [1], [0, 0, 1, 1], [], []>} : vector<8x32xbf16>, vector<32x128xbf16>, vector<8x128xf32> -> vector<8x128xf32>
    %118 = arith.truncf %117 : vector<8x128xf32> to vector<8x128xbf16>
    %c3_107 = arith.constant 3 : index
    %c0_108 = arith.constant 0 : index
    %c0_109 = arith.constant 0 : index
    %119 = vector.load %arg7[%c3_107, %c0_108, %c0_109] : memref<9x128x128xbf16, #tpu.memory_space<vmem>>, vector<1x128x128xbf16>
    %120 = vector.shape_cast %119 : vector<1x128x128xbf16> to vector<128x128xbf16>
    %cst_110 = arith.constant dense<0.000000e+00> : vector<8x128xf32>
    %121 = tpu.matmul %118, %120, %cst_110 {dimension_numbers = #tpu.dot_dimension_numbers<[1], [0], [0], [1], [0, 0, 1, 1], [], []>} : vector<8x128xbf16>, vector<128x128xbf16>, vector<8x128xf32> -> vector<8x128xf32>
    %122 = arith.addf %114, %121 : vector<8x128xf32>
    %c4_111 = arith.constant 4 : index
    %c0_112 = arith.constant 0 : index
    %c0_113 = arith.constant 0 : index
    %123 = vector.load %arg6[%c4_111, %c0_112, %c0_113] : memref<9x8x32xbf16, #tpu.memory_space<vmem>>, vector<1x8x32xbf16>
    %124 = vector.shape_cast %123 : vector<1x8x32xbf16> to vector<8x32xbf16>
    %cst_114 = arith.constant dense<0.000000e+00> : vector<8x128xf32>
    %125 = tpu.matmul %124, %89, %cst_114 {dimension_numbers = #tpu.dot_dimension_numbers<[1], [0], [0], [1], [0, 0, 1, 1], [], []>} : vector<8x32xbf16>, vector<32x128xbf16>, vector<8x128xf32> -> vector<8x128xf32>
    %126 = arith.truncf %125 : vector<8x128xf32> to vector<8x128xbf16>
    %c4_115 = arith.constant 4 : index
    %c0_116 = arith.constant 0 : index
    %c0_117 = arith.constant 0 : index
    %127 = vector.load %arg7[%c4_115, %c0_116, %c0_117] : memref<9x128x128xbf16, #tpu.memory_space<vmem>>, vector<1x128x128xbf16>
    %128 = vector.shape_cast %127 : vector<1x128x128xbf16> to vector<128x128xbf16>
    %cst_118 = arith.constant dense<0.000000e+00> : vector<8x128xf32>
    %129 = tpu.matmul %126, %128, %cst_118 {dimension_numbers = #tpu.dot_dimension_numbers<[1], [0], [0], [1], [0, 0, 1, 1], [], []>} : vector<8x128xbf16>, vector<128x128xbf16>, vector<8x128xf32> -> vector<8x128xf32>
    %130 = arith.addf %122, %129 : vector<8x128xf32>
    %c5_119 = arith.constant 5 : index
    %c0_120 = arith.constant 0 : index
    %c0_121 = arith.constant 0 : index
    %131 = vector.load %arg6[%c5_119, %c0_120, %c0_121] : memref<9x8x32xbf16, #tpu.memory_space<vmem>>, vector<1x8x32xbf16>
    %132 = vector.shape_cast %131 : vector<1x8x32xbf16> to vector<8x32xbf16>
    %cst_122 = arith.constant dense<0.000000e+00> : vector<8x128xf32>
    %133 = tpu.matmul %132, %89, %cst_122 {dimension_numbers = #tpu.dot_dimension_numbers<[1], [0], [0], [1], [0, 0, 1, 1], [], []>} : vector<8x32xbf16>, vector<32x128xbf16>, vector<8x128xf32> -> vector<8x128xf32>
    %134 = arith.truncf %133 : vector<8x128xf32> to vector<8x128xbf16>
    %c5_123 = arith.constant 5 : index
    %c0_124 = arith.constant 0 : index
    %c0_125 = arith.constant 0 : index
    %135 = vector.load %arg7[%c5_123, %c0_124, %c0_125] : memref<9x128x128xbf16, #tpu.memory_space<vmem>>, vector<1x128x128xbf16>
    %136 = vector.shape_cast %135 : vector<1x128x128xbf16> to vector<128x128xbf16>
    %cst_126 = arith.constant dense<0.000000e+00> : vector<8x128xf32>
    %137 = tpu.matmul %134, %136, %cst_126 {dimension_numbers = #tpu.dot_dimension_numbers<[1], [0], [0], [1], [0, 0, 1, 1], [], []>} : vector<8x128xbf16>, vector<128x128xbf16>, vector<8x128xf32> -> vector<8x128xf32>
    %138 = arith.addf %130, %137 : vector<8x128xf32>
    %c6_127 = arith.constant 6 : index
    %c0_128 = arith.constant 0 : index
    %c0_129 = arith.constant 0 : index
    %139 = vector.load %arg6[%c6_127, %c0_128, %c0_129] : memref<9x8x32xbf16, #tpu.memory_space<vmem>>, vector<1x8x32xbf16>
    %140 = vector.shape_cast %139 : vector<1x8x32xbf16> to vector<8x32xbf16>
    %cst_130 = arith.constant dense<0.000000e+00> : vector<8x128xf32>
    %141 = tpu.matmul %140, %89, %cst_130 {dimension_numbers = #tpu.dot_dimension_numbers<[1], [0], [0], [1], [0, 0, 1, 1], [], []>} : vector<8x32xbf16>, vector<32x128xbf16>, vector<8x128xf32> -> vector<8x128xf32>
    %142 = arith.truncf %141 : vector<8x128xf32> to vector<8x128xbf16>
    %c6_131 = arith.constant 6 : index
    %c0_132 = arith.constant 0 : index
    %c0_133 = arith.constant 0 : index
    %143 = vector.load %arg7[%c6_131, %c0_132, %c0_133] : memref<9x128x128xbf16, #tpu.memory_space<vmem>>, vector<1x128x128xbf16>
    %144 = vector.shape_cast %143 : vector<1x128x128xbf16> to vector<128x128xbf16>
    %cst_134 = arith.constant dense<0.000000e+00> : vector<8x128xf32>
    %145 = tpu.matmul %142, %144, %cst_134 {dimension_numbers = #tpu.dot_dimension_numbers<[1], [0], [0], [1], [0, 0, 1, 1], [], []>} : vector<8x128xbf16>, vector<128x128xbf16>, vector<8x128xf32> -> vector<8x128xf32>
    %146 = arith.addf %138, %145 : vector<8x128xf32>
    %c7_135 = arith.constant 7 : index
    %c0_136 = arith.constant 0 : index
    %c0_137 = arith.constant 0 : index
    %147 = vector.load %arg6[%c7_135, %c0_136, %c0_137] : memref<9x8x32xbf16, #tpu.memory_space<vmem>>, vector<1x8x32xbf16>
    %148 = vector.shape_cast %147 : vector<1x8x32xbf16> to vector<8x32xbf16>
    %cst_138 = arith.constant dense<0.000000e+00> : vector<8x128xf32>
    %149 = tpu.matmul %148, %89, %cst_138 {dimension_numbers = #tpu.dot_dimension_numbers<[1], [0], [0], [1], [0, 0, 1, 1], [], []>} : vector<8x32xbf16>, vector<32x128xbf16>, vector<8x128xf32> -> vector<8x128xf32>
    %150 = arith.truncf %149 : vector<8x128xf32> to vector<8x128xbf16>
    %c7_139 = arith.constant 7 : index
    %c0_140 = arith.constant 0 : index
    %c0_141 = arith.constant 0 : index
    %151 = vector.load %arg7[%c7_139, %c0_140, %c0_141] : memref<9x128x128xbf16, #tpu.memory_space<vmem>>, vector<1x128x128xbf16>
    %152 = vector.shape_cast %151 : vector<1x128x128xbf16> to vector<128x128xbf16>
    %cst_142 = arith.constant dense<0.000000e+00> : vector<8x128xf32>
    %153 = tpu.matmul %150, %152, %cst_142 {dimension_numbers = #tpu.dot_dimension_numbers<[1], [0], [0], [1], [0, 0, 1, 1], [], []>} : vector<8x128xbf16>, vector<128x128xbf16>, vector<8x128xf32> -> vector<8x128xf32>
    %154 = arith.addf %146, %153 : vector<8x128xf32>
    %c8_143 = arith.constant 8 : index
    %c0_144 = arith.constant 0 : index
    %c0_145 = arith.constant 0 : index
    %155 = vector.load %arg6[%c8_143, %c0_144, %c0_145] : memref<9x8x32xbf16, #tpu.memory_space<vmem>>, vector<1x8x32xbf16>
    %156 = vector.shape_cast %155 : vector<1x8x32xbf16> to vector<8x32xbf16>
    %cst_146 = arith.constant dense<0.000000e+00> : vector<8x128xf32>
    %157 = tpu.matmul %156, %89, %cst_146 {dimension_numbers = #tpu.dot_dimension_numbers<[1], [0], [0], [1], [0, 0, 1, 1], [], []>} : vector<8x32xbf16>, vector<32x128xbf16>, vector<8x128xf32> -> vector<8x128xf32>
    %158 = arith.truncf %157 : vector<8x128xf32> to vector<8x128xbf16>
    %c8_147 = arith.constant 8 : index
    %c0_148 = arith.constant 0 : index
    %c0_149 = arith.constant 0 : index
    %159 = vector.load %arg7[%c8_147, %c0_148, %c0_149] : memref<9x128x128xbf16, #tpu.memory_space<vmem>>, vector<1x128x128xbf16>
    %160 = vector.shape_cast %159 : vector<1x128x128xbf16> to vector<128x128xbf16>
    %cst_150 = arith.constant dense<0.000000e+00> : vector<8x128xf32>
    %161 = tpu.matmul %158, %160, %cst_150 {dimension_numbers = #tpu.dot_dimension_numbers<[1], [0], [0], [1], [0, 0, 1, 1], [], []>} : vector<8x128xbf16>, vector<128x128xbf16>, vector<8x128xf32> -> vector<8x128xf32>
    %162 = arith.addf %154, %161 : vector<8x128xf32>
    %c0_151 = arith.constant 0 : index
    %c0_152 = arith.constant 0 : index
    %163 = vector.load %arg8[%c0_151, %c0_152] : memref<1x128xf32, #tpu.memory_space<vmem>>, vector<1x128xf32>
    %164 = vector.broadcast %163 : vector<1x128xf32> to vector<8x128xf32>
    %165 = arith.addf %162, %164 : vector<8x128xf32>
    %cst_153 = arith.constant 0.000000e+00 : f32
    %166 = vector.broadcast %cst_153 : f32 to vector<8x128xf32>
    %167 = arith.maximumf %165, %166 : vector<8x128xf32>
    %c0_154 = arith.constant 0 : index
    %c0_155 = arith.constant 0 : index
    %168 = vector.load %arg11[%c0_154, %c0_155] : memref<8x128xf32, #tpu.memory_space<vmem>>, vector<8x128xf32>
    tpu.vector_store %arg11[%c0_154, %c0_155], %167 {strides = array<i32>} : memref<8x128xf32, #tpu.memory_space<vmem>>, vector<8x128xf32>,
    return
  }
}

</mosaic_0001>

<llo_original>
// kernel: simple_net_forward.1
$region0: #{simple_net_forward.1}
  #allocation0 [shape = 'u32[]', space=smem, size = 0x4, offset = 0x4, fixed_abs, tag = 'smem constant byte address 0x4 - core index']
  #allocation1 [shape = 'u32[72,128]{1,0:T(1,128)}', space=vmem, size = 0x9000, scoped, tag = 'internal scratch']
  %s0 = inlined_call_operand.vmem [shape: bf16[128,27], index: 0, kind: input, shape index: {}]
  %s1 = inlined_call_operand.vmem [shape: bf16[27,128], index: 1, kind: input, shape index: {}]
  %s2 = inlined_call_operand.vmem [shape: f32[1,128], index: 2, kind: input, shape index: {}]
  %s3 = inlined_call_operand.vmem [shape: bf16[9,32,128], index: 3, kind: input, shape index: {}]
  %s4 = inlined_call_operand.vmem [shape: bf16[9,128,128], index: 4, kind: input, shape index: {}]
  %s5 = inlined_call_operand.vmem [shape: f32[1,128], index: 5, kind: input, shape index: {}]
  %s6 = inlined_call_operand.vmem [shape: bf16[9,8,32], index: 6, kind: input, shape index: {}]
  %s7 = inlined_call_operand.vmem [shape: bf16[9,128,128], index: 7, kind: input, shape index: {}]
  %s8 = inlined_call_operand.vmem [shape: f32[1,128], index: 8, kind: input, shape index: {}]
  %s9 = inlined_call_operand.hbm [shape: f32[128,128], index: 9, kind: output, shape index: {0}]
  %s10 = inlined_call_operand.hbm [shape: f32[32,128], index: 10, kind: output, shape index: {1}]
  %s11 = inlined_call_operand.hbm [shape: f32[8,128], index: 11, kind: output, shape index: {2}]
  %12 = xla_tuple %s9, %s10, %s11
  %s13 = sld [smem:[#allocation0]]
  $region62: #{simple_net_forward.1} parent=0
    _
  %s15 = ssub.s32 1, %s13
  %s16 = scalar_select 0, %s15, %s13
  $region1: #{simple_net_forward.1} parent=0
    #allocation2 [shape = 'u8[65536]{0}', space=vmem, size = 0x10000, scoped, tag = 'output window, operand 0, single buffered']
    #allocation3 [shape = 's32[1]{0}', space=sflag, size = 0x4, scoped, tag = 'scoped memory for simple_net_forward.1']
    #allocation4 [shape = 'u8[16384]{0}', space=vmem, size = 0x4000, scoped, tag = 'output window, operand 1, single buffered']
    #allocation5 [shape = 's32[1]{0}', space=sflag, size = 0x4, scoped, tag = 'scoped memory for simple_net_forward.1']
    #allocation6 [shape = 'u8[4096]{0}', space=vmem, size = 0x1000, scoped, tag = 'output window, operand 2, single buffered']
    %17 = vsyncpa [#allocation3], 0
    %18 = vsyncpa [#allocation5], 0
    // Predicated region
    $region2: #{simple_net_forward.1} parent=1 // pred_check
      _
    $region3: #{simple_net_forward.1} parent=1 // pred_check_branch
      %20 = sbr.rel (0) target = $region5
    $region4: #{simple_net_forward.1} parent=1 // pred_region
      _
    $region5: #{simple_net_forward.1} parent=1 // pred_fallthru
      _
    // Predicated region
    $region6: #{simple_net_forward.1} parent=1 // pred_check
      _
    $region7: #{simple_net_forward.1} parent=1 // pred_check_branch
      %22 = sbr.rel (0) target = $region9
    $region8: #{simple_net_forward.1} parent=1 // pred_region
      _
    $region9: #{simple_net_forward.1} parent=1 // pred_fallthru
      _
    // Predicated region
    $region10: #{simple_net_forward.1} parent=1 // pred_check
      _
    $region11: #{simple_net_forward.1} parent=1 // pred_check_branch
      %24 = sbr.rel (0) target = $region13
    $region12: #{simple_net_forward.1} parent=1 // pred_region
      _
    $region13: #{simple_net_forward.1} parent=1 // pred_fallthru
      _
    // Predicated region
    $region14: #{simple_net_forward.1} parent=1 // pred_check
      _
    $region15: #{simple_net_forward.1} parent=1 // pred_check_branch
      %26 = sbr.rel (0) target = $region17
    $region16: #{simple_net_forward.1} parent=1 // pred_region
      _
    $region17: #{simple_net_forward.1} parent=1 // pred_fallthru
      _
    // Predicated region
    $region18: #{simple_net_forward.1} parent=1 // pred_check
      _
    $region19: #{simple_net_forward.1} parent=1 // pred_check_branch
      %28 = sbr.rel (0) target = $region21
    $region20: #{simple_net_forward.1} parent=1 // pred_region
      _
    $region21: #{simple_net_forward.1} parent=1 // pred_fallthru
      _
    // Predicated region
    $region22: #{simple_net_forward.1} parent=1 // pred_check
      _
    $region23: #{simple_net_forward.1} parent=1 // pred_check_branch
      %30 = sbr.rel (0) target = $region25
    $region24: #{simple_net_forward.1} parent=1 // pred_region
      _
    $region25: #{simple_net_forward.1} parent=1 // pred_fallthru
      _
    // Predicated region
    $region26: #{simple_net_forward.1} parent=1 // pred_check
      _
    $region27: #{simple_net_forward.1} parent=1 // pred_check_branch
      %32 = sbr.rel (0) target = $region29
    $region28: #{simple_net_forward.1} parent=1 // pred_region
      _
    $region29: #{simple_net_forward.1} parent=1 // pred_fallthru
      _
    // Predicated region
    $region30: #{simple_net_forward.1} parent=1 // pred_check
      _
    $region31: #{simple_net_forward.1} parent=1 // pred_check_branch
      %34 = sbr.rel (0) target = $region33
    $region32: #{simple_net_forward.1} parent=1 // pred_region
      _
    $region33: #{simple_net_forward.1} parent=1 // pred_fallthru
      _
    // Predicated region
    $region34: #{simple_net_forward.1} parent=1 // pred_check
      _
    $region35: #{simple_net_forward.1} parent=1 // pred_check_branch
      %36 = sbr.rel (0) target = $region37
    $region36: #{simple_net_forward.1} parent=1 // pred_region
      _
    $region37: #{simple_net_forward.1} parent=1 // pred_fallthru
      _
    %v38 = vld [vmem:[%s0] sm:$0xf]
    %v39 = vld [vmem:[%s0 + $0x4] sm:$0xf]
    %v40 = vld [vmem:[%s0 + $0x8] sm:$0xf]
    %v41 = vld [vmem:[%s0 + $0xc] sm:$0xf]
    %v42 = vld [vmem:[%s0 + $0x10] sm:$0xf]
    %v43 = vld [vmem:[%s0 + $0x14] sm:$0xf]
    %v44 = vld [vmem:[%s0 + $0x18] sm:$0xf]
    %v45 = vld [vmem:[%s0 + $0x1c] sm:$0xf]
    %v46 = vld [vmem:[%s0 + $0x20] sm:$0xf]
    %v47 = vld [vmem:[%s0 + $0x24] sm:$0xf]
    %v48 = vld [vmem:[%s0 + $0x28] sm:$0xf]
    %v49 = vld [vmem:[%s0 + $0x2c] sm:$0xf]
    %v50 = vld [vmem:[%s0 + $0x30] sm:$0xf]
    %v51 = vld [vmem:[%s0 + $0x34] sm:$0xf]
    %v52 = vld [vmem:[%s0 + $0x38] sm:$0xf]
    %v53 = vld [vmem:[%s0 + $0x3c] sm:$0xf]
    %v54 = vld [vmem:[%s1] sm:$0xf]
    %v55 = vld [vmem:[%s1 + $0x4] sm:$0xf]
    %v56 = vld [vmem:[%s1 + $0x8] sm:$0xf]
    %v57 = vld [vmem:[%s1 + $0xc] sm:$0x3]
    %v58 = vld [vmem:[%s2] sm:$0x1]
    %v60 = vperm.slane %v58, 0
    %v78 = vunpack.c.l.b16 %v38
    %v79 = vunpack.c.l.b16 %v39
    %v80 = vunpack.c.l.b16 %v40
    %v81 = vunpack.c.l.b16 %v41
    %v82 = vunpack.c.l.b16 %v42
    %v83 = vunpack.c.l.b16 %v43
    %v84 = vunpack.c.l.b16 %v44
    %v85 = vunpack.c.l.b16 %v45
    %v86 = vunpack.c.l.b16 %v46
    %v87 = vunpack.c.l.b16 %v47
    %v88 = vunpack.c.l.b16 %v48
    %v89 = vunpack.c.l.b16 %v49
    %v90 = vunpack.c.l.b16 %v50
    %v91 = vunpack.c.l.b16 %v51
    %v92 = vunpack.c.l.b16 %v52
    %v93 = vunpack.c.l.b16 %v53
    %v94 = vpack.c.b16 %v79, %v78
    %v95 = vpack.c.b16 %v81, %v80
    %v96 = vpack.c.b16 %v83, %v82
    %v97 = vpack.c.b16 %v85, %v84
    %v98 = vpack.c.b16 %v87, %v86
    %v99 = vpack.c.b16 %v89, %v88
    %v100 = vpack.c.b16 %v91, %v90
    %v101 = vpack.c.b16 %v93, %v92
    %v106 = vunpack.c.l.b16 %v54
    %v107 = vunpack.c.l.b16 %v55
    %v108 = vunpack.c.l.b16 %v56
    %v109 = vunpack.c.l.b16 %v57
    %v110 = vpack.c.b16 %v107, %v106
    %v111 = vpack.c.b16 %v109, %v108
    %vm113 = vcmask 220160
    %v115 = vsel %vm113, %v94, 0
    %v118 = vsel %vm113, %v95, 0
    %v121 = vsel %vm113, %v96, 0
    %v124 = vsel %vm113, %v97, 0
    %v127 = vsel %vm113, %v98, 0
    %v130 = vsel %vm113, %v99, 0
    %v133 = vsel %vm113, %v100, 0
    %v136 = vsel %vm113, %v101, 0
    %vm138 = vcmask 1044480
    %vm139 = vcmask 1045504
    %v140 = vsel %vm138, 4294967295, 65535
    %v141 = vsel %vm139, %v140, 0
    %v143 = vand.u32 %v111, %v141
    %145 = vmatpush.bf16.msra.mxu0 0
    %146 = vmatpush.bf16.msra.mxu0 0
    %147 = vmatpush.bf16.msra.mxu0 0
    %148 = vmatpush.bf16.msra.mxu0 0
    %149 = vmatpush.bf16.msra.mxu0 0
    %150 = vmatpush.bf16.msra.mxu0 0
    %151 = vmatpush.bf16.msra.mxu0 %v143
    %152 = vmatpush.bf16.msra.mxu0 %v110
    %153 = vmatmul.bf16.gmra.mxu0 %v115
    %v154 = vpop.f32.mrf.mxu0
    %v155 = vadd.f32 %v60, %v154
    %v156 = vpop.f32.mrf.mxu0
    %v157 = vadd.f32 %v60, %v156
    %158 = vmatmul.bf16.gmra.mxu0 %v118
    %v159 = vpop.f32.mrf.mxu0
    %v160 = vadd.f32 %v60, %v159
    %v161 = vpop.f32.mrf.mxu0
    %v162 = vadd.f32 %v60, %v161
    %163 = vmatmul.bf16.gmra.mxu0 %v121
    %v164 = vpop.f32.mrf.mxu0
    %v165 = vadd.f32 %v60, %v164
    %v166 = vpop.f32.mrf.mxu0
    %v167 = vadd.f32 %v60, %v166
    %168 = vmatmul.bf16.gmra.mxu0 %v124
    %v169 = vpop.f32.mrf.mxu0
    %v170 = vadd.f32 %v60, %v169
    %v171 = vpop.f32.mrf.mxu0
    %v172 = vadd.f32 %v60, %v171
    %173 = vmatmul.bf16.gmra.mxu0 %v127
    %v174 = vpop.f32.mrf.mxu0
    %v175 = vadd.f32 %v60, %v174
    %v176 = vpop.f32.mrf.mxu0
    %v177 = vadd.f32 %v60, %v176
    %178 = vmatmul.bf16.gmra.mxu0 %v130
    %v179 = vpop.f32.mrf.mxu0
    %v180 = vadd.f32 %v60, %v179
    %v181 = vpop.f32.mrf.mxu0
    %v182 = vadd.f32 %v60, %v181
    %183 = vmatmul.bf16.gmra.mxu0 %v133
    %v184 = vpop.f32.mrf.mxu0
    %v185 = vadd.f32 %v60, %v184
    %v186 = vpop.f32.mrf.mxu0
    %v187 = vadd.f32 %v60, %v186
    %188 = vmatmul.bf16.gmra.mxu0 %v136
    %v189 = vpop.f32.mrf.mxu0
    %v190 = vadd.f32 %v60, %v189
    %v191 = vpop.f32.mrf.mxu0
    %v192 = vadd.f32 %v60, %v191
    %193 = vdwg.mxu0
    %v194 = vmax.f32 %v155, 0.0
    %v195 = vmax.f32 %v157, 0.0
    %v196 = vmax.f32 %v160, 0.0
    %v197 = vmax.f32 %v162, 0.0
    %v198 = vmax.f32 %v165, 0.0
    %v199 = vmax.f32 %v167, 0.0
    %v200 = vmax.f32 %v170, 0.0
    %v201 = vmax.f32 %v172, 0.0
    %v202 = vmax.f32 %v175, 0.0
    %v203 = vmax.f32 %v177, 0.0
    %v204 = vmax.f32 %v180, 0.0
    %v205 = vmax.f32 %v182, 0.0
    %v206 = vmax.f32 %v185, 0.0
    %v207 = vmax.f32 %v187, 0.0
    %v208 = vmax.f32 %v190, 0.0
    %v209 = vmax.f32 %v192, 0.0
    %210 = vst [vmem:[#allocation2] sm:$0xff] %v194
    %211 = vst [vmem:[#allocation2 + $0x8] sm:$0xff] %v195
    %212 = vst [vmem:[#allocation2 + $0x10] sm:$0xff] %v196
    %213 = vst [vmem:[#allocation2 + $0x18] sm:$0xff] %v197
    %214 = vst [vmem:[#allocation2 + $0x20] sm:$0xff] %v198
    %215 = vst [vmem:[#allocation2 + $0x28] sm:$0xff] %v199
    %216 = vst [vmem:[#allocation2 + $0x30] sm:$0xff] %v200
    %217 = vst [vmem:[#allocation2 + $0x38] sm:$0xff] %v201
    %218 = vst [vmem:[#allocation2 + $0x40] sm:$0xff] %v202
    %219 = vst [vmem:[#allocation2 + $0x48] sm:$0xff] %v203
    %220 = vst [vmem:[#allocation2 + $0x50] sm:$0xff] %v204
    %221 = vst [vmem:[#allocation2 + $0x58] sm:$0xff] %v205
    %222 = vst [vmem:[#allocation2 + $0x60] sm:$0xff] %v206
    %223 = vst [vmem:[#allocation2 + $0x68] sm:$0xff] %v207
    %224 = vst [vmem:[#allocation2 + $0x70] sm:$0xff] %v208
    %225 = vst [vmem:[#allocation2 + $0x78] sm:$0xff] %v209
    %v226 = vpack.c.bf16 %v195, %v194
    %v227 = vpack.c.bf16 %v197, %v196
    %v228 = vpack.c.bf16 %v199, %v198
    %v229 = vpack.c.bf16 %v201, %v200
    %v230 = vpack.c.bf16 %v203, %v202
    %v231 = vpack.c.bf16 %v205, %v204
    %v232 = vpack.c.bf16 %v207, %v206
    %v233 = vpack.c.bf16 %v209, %v208
    %v234 = vld [vmem:[%s3] sm:$0xf]
    %v235 = vld [vmem:[%s3 + $0x4] sm:$0xf]
    %v236 = vld [vmem:[%s3 + $0x8] sm:$0xf]
    %v237 = vld [vmem:[%s3 + $0xc] sm:$0xf]
    %v242 = vunpack.c.l.b16 %v234
    %v243 = vunpack.c.l.b16 %v235
    %v244 = vunpack.c.l.b16 %v236
    %v245 = vunpack.c.l.b16 %v237
    %v246 = vpack.c.b16 %v243, %v242
    %v247 = vpack.c.b16 %v245, %v244
    %250 = vmatpush.bf16.msra.mxu0 %v233
    %251 = vmatpush.bf16.msra.mxu0 %v232
    %252 = vmatpush.bf16.msra.mxu0 %v231
    %253 = vmatpush.bf16.msra.mxu0 %v230
    %254 = vmatpush.bf16.msra.mxu0 %v229
    %255 = vmatpush.bf16.msra.mxu0 %v228
    %256 = vmatpush.bf16.msra.mxu0 %v227
    %257 = vmatpush.bf16.msra.mxu0 %v226
    %258 = vmatmul.bf16.gmra.mxu0 %v246
    %v259 = vpop.f32.mrf.mxu0
    %v260 = vadd.f32 0.0, %v259
    %v261 = vpop.f32.mrf.mxu0
    %v262 = vadd.f32 0.0, %v261
    %263 = vmatmul.bf16.gmra.mxu0 %v247
    %v264 = vpop.f32.mrf.mxu0
    %v265 = vadd.f32 0.0, %v264
    %v266 = vpop.f32.mrf.mxu0
    %v267 = vadd.f32 0.0, %v266
    %268 = vdwg.mxu0
    %v269 = vpack.c.bf16 %v262, %v260
    %v270 = vpack.c.bf16 %v267, %v265
    %v271 = vld [vmem:[%s4] sm:$0xf]
    %v272 = vld [vmem:[%s4 + $0x4] sm:$0xf]
    %v273 = vld [vmem:[%s4 + $0x8] sm:$0xf]
    %v274 = vld [vmem:[%s4 + $0xc] sm:$0xf]
    %v275 = vld [vmem:[%s4 + $0x10] sm:$0xf]
    %v276 = vld [vmem:[%s4 + $0x14] sm:$0xf]
    %v277 = vld [vmem:[%s4 + $0x18] sm:$0xf]
    %v278 = vld [vmem:[%s4 + $0x1c] sm:$0xf]
    %v279 = vld [vmem:[%s4 + $0x20] sm:$0xf]
    %v280 = vld [vmem:[%s4 + $0x24] sm:$0xf]
    %v281 = vld [vmem:[%s4 + $0x28] sm:$0xf]
    %v282 = vld [vmem:[%s4 + $0x2c] sm:$0xf]
    %v283 = vld [vmem:[%s4 + $0x30] sm:$0xf]
    %v284 = vld [vmem:[%s4 + $0x34] sm:$0xf]
    %v285 = vld [vmem:[%s4 + $0x38] sm:$0xf]
    %v286 = vld [vmem:[%s4 + $0x3c] sm:$0xf]
    %s287 = scalar_lea.vmem %s3, 16
    %v288 = vld [vmem:[%s287] sm:$0xf]
    %v289 = vld [vmem:[%s287 + $0x4] sm:$0xf]
    %v290 = vld [vmem:[%s287 + $0x8] sm:$0xf]
    %v291 = vld [vmem:[%s287 + $0xc] sm:$0xf]
    %v296 = vunpack.c.l.b16 %v288
    %v297 = vunpack.c.l.b16 %v289
    %v298 = vunpack.c.l.b16 %v290
    %v299 = vunpack.c.l.b16 %v291
    %v300 = vpack.c.b16 %v297, %v296
    %v301 = vpack.c.b16 %v299, %v298
    %304 = vmatpush.bf16.msra.mxu0 %v233
    %305 = vmatpush.bf16.msra.mxu0 %v232
    %306 = vmatpush.bf16.msra.mxu0 %v231
    %307 = vmatpush.bf16.msra.mxu0 %v230
    %308 = vmatpush.bf16.msra.mxu0 %v229
    %309 = vmatpush.bf16.msra.mxu0 %v228
    %310 = vmatpush.bf16.msra.mxu0 %v227
    %311 = vmatpush.bf16.msra.mxu0 %v226
    %312 = vmatmul.bf16.gmra.mxu0 %v300
    %v313 = vpop.f32.mrf.mxu0
    %v314 = vadd.f32 0.0, %v313
    %v315 = vpop.f32.mrf.mxu0
    %v316 = vadd.f32 0.0, %v315
    %317 = vmatmul.bf16.gmra.mxu0 %v301
    %v318 = vpop.f32.mrf.mxu0
    %v319 = vadd.f32 0.0, %v318
    %v320 = vpop.f32.mrf.mxu0
    %v321 = vadd.f32 0.0, %v320
    %322 = vdwg.mxu0
    %v323 = vpack.c.bf16 %v316, %v314
    %v324 = vpack.c.bf16 %v321, %v319
    %s325 = scalar_lea.vmem %s4, 64
    %v326 = vld [vmem:[%s325] sm:$0xf]
    %v327 = vld [vmem:[%s325 + $0x4] sm:$0xf]
    %v328 = vld [vmem:[%s325 + $0x8] sm:$0xf]
    %v329 = vld [vmem:[%s325 + $0xc] sm:$0xf]
    %v330 = vld [vmem:[%s325 + $0x10] sm:$0xf]
    %v331 = vld [vmem:[%s325 + $0x14] sm:$0xf]
    %v332 = vld [vmem:[%s325 + $0x18] sm:$0xf]
    %v333 = vld [vmem:[%s325 + $0x1c] sm:$0xf]
    %v334 = vld [vmem:[%s325 + $0x20] sm:$0xf]
    %v335 = vld [vmem:[%s325 + $0x24] sm:$0xf]
    %v336 = vld [vmem:[%s325 + $0x28] sm:$0xf]
    %v337 = vld [vmem:[%s325 + $0x2c] sm:$0xf]
    %v338 = vld [vmem:[%s325 + $0x30] sm:$0xf]
    %v339 = vld [vmem:[%s325 + $0x34] sm:$0xf]
    %v340 = vld [vmem:[%s325 + $0x38] sm:$0xf]
    %v341 = vld [vmem:[%s325 + $0x3c] sm:$0xf]
    %v358 = vunpack.c.l.b16 %v326
    %v359 = vunpack.c.l.b16 %v327
    %v360 = vunpack.c.l.b16 %v328
    %v361 = vunpack.c.l.b16 %v329
    %v362 = vunpack.c.l.b16 %v330
    %v363 = vunpack.c.l.b16 %v331
    %v364 = vunpack.c.l.b16 %v332
    %v365 = vunpack.c.l.b16 %v333
    %v366 = vunpack.c.l.b16 %v334
    %v367 = vunpack.c.l.b16 %v335
    %v368 = vunpack.c.l.b16 %v336
    %v369 = vunpack.c.l.b16 %v337
    %v370 = vunpack.c.l.b16 %v338
    %v371 = vunpack.c.l.b16 %v339
    %v372 = vunpack.c.l.b16 %v340
    %v373 = vunpack.c.l.b16 %v341
    %v374 = vpack.c.b16 %v359, %v358
    %v375 = vpack.c.b16 %v361, %v360
    %v376 = vpack.c.b16 %v363, %v362
    %v377 = vpack.c.b16 %v365, %v364
    %v378 = vpack.c.b16 %v367, %v366
    %v379 = vpack.c.b16 %v369, %v368
    %v380 = vpack.c.b16 %v371, %v370
    %v381 = vpack.c.b16 %v373, %v372
    %390 = vmatpush.bf16.msra.mxu0 %v381
    %391 = vmatpush.bf16.msra.mxu0 %v380
    %392 = vmatpush.bf16.msra.mxu0 %v379
    %393 = vmatpush.bf16.msra.mxu0 %v378
    %394 = vmatpush.bf16.msra.mxu0 %v377
    %395 = vmatpush.bf16.msra.mxu0 %v376
    %396 = vmatpush.bf16.msra.mxu0 %v375
    %397 = vmatpush.bf16.msra.mxu0 %v374
    %398 = vmatmul.bf16.gmra.mxu0 %v323
    %v399 = vpop.f32.mrf.mxu0
    %v400 = vadd.f32 0.0, %v399
    %v401 = vpop.f32.mrf.mxu0
    %v402 = vadd.f32 0.0, %v401
    %403 = vmatmul.bf16.gmra.mxu0 %v324
    %v404 = vpop.f32.mrf.mxu0
    %v405 = vadd.f32 0.0, %v404
    %v406 = vpop.f32.mrf.mxu0
    %v407 = vadd.f32 0.0, %v406
    %408 = vdwg.mxu0
    %v425 = vunpack.c.l.b16 %v271
    %v426 = vunpack.c.l.b16 %v272
    %v427 = vunpack.c.l.b16 %v273
    %v428 = vunpack.c.l.b16 %v274
    %v429 = vunpack.c.l.b16 %v275
    %v430 = vunpack.c.l.b16 %v276
    %v431 = vunpack.c.l.b16 %v277
    %v432 = vunpack.c.l.b16 %v278
    %v433 = vunpack.c.l.b16 %v279
    %v434 = vunpack.c.l.b16 %v280
    %v435 = vunpack.c.l.b16 %v281
    %v436 = vunpack.c.l.b16 %v282
    %v437 = vunpack.c.l.b16 %v283
    %v438 = vunpack.c.l.b16 %v284
    %v439 = vunpack.c.l.b16 %v285
    %v440 = vunpack.c.l.b16 %v286
    %v441 = vpack.c.b16 %v426, %v425
    %v442 = vpack.c.b16 %v428, %v427
    %v443 = vpack.c.b16 %v430, %v429
    %v444 = vpack.c.b16 %v432, %v431
    %v445 = vpack.c.b16 %v434, %v433
    %v446 = vpack.c.b16 %v436, %v435
    %v447 = vpack.c.b16 %v438, %v437
    %v448 = vpack.c.b16 %v440, %v439
    %457 = vmatpush.bf16.msra.mxu0 %v448
    %458 = vmatpush.bf16.msra.mxu0 %v447
    %459 = vmatpush.bf16.msra.mxu0 %v446
    %460 = vmatpush.bf16.msra.mxu0 %v445
    %461 = vmatpush.bf16.msra.mxu0 %v444
    %462 = vmatpush.bf16.msra.mxu0 %v443
    %463 = vmatpush.bf16.msra.mxu0 %v442
    %464 = vmatpush.bf16.msra.mxu0 %v441
    %465 = vmatmul.bf16.gmra.mxu0 %v269
    %v466 = vpop.f32.mrf.mxu0
    %v467 = vadd.f32 %v400, %v466
    %v468 = vpop.f32.mrf.mxu0
    %v469 = vadd.f32 %v402, %v468
    %470 = vmatmul.bf16.gmra.mxu0 %v270
    %v471 = vpop.f32.mrf.mxu0
    %v472 = vadd.f32 %v405, %v471
    %v473 = vpop.f32.mrf.mxu0
    %v474 = vadd.f32 %v407, %v473
    %475 = vdwg.mxu0
    %s476 = scalar_lea.vmem %s3, 32
    %v477 = vld [vmem:[%s476] sm:$0xf]
    %v478 = vld [vmem:[%s476 + $0x4] sm:$0xf]
    %v479 = vld [vmem:[%s476 + $0x8] sm:$0xf]
    %v480 = vld [vmem:[%s476 + $0xc] sm:$0xf]
    %v485 = vunpack.c.l.b16 %v477
    %v486 = vunpack.c.l.b16 %v478
    %v487 = vunpack.c.l.b16 %v479
    %v488 = vunpack.c.l.b16 %v480
    %v489 = vpack.c.b16 %v486, %v485
    %v490 = vpack.c.b16 %v488, %v487
    %493 = vmatpush.bf16.msra.mxu0 %v233
    %494 = vmatpush.bf16.msra.mxu0 %v232
    %495 = vmatpush.bf16.msra.mxu0 %v231
    %496 = vmatpush.bf16.msra.mxu0 %v230
    %497 = vmatpush.bf16.msra.mxu0 %v229
    %498 = vmatpush.bf16.msra.mxu0 %v228
    %499 = vmatpush.bf16.msra.mxu0 %v227
    %500 = vmatpush.bf16.msra.mxu0 %v226
    %501 = vmatmul.bf16.gmra.mxu0 %v489
    %v502 = vpop.f32.mrf.mxu0
    %v503 = vadd.f32 0.0, %v502
    %v504 = vpop.f32.mrf.mxu0
    %v505 = vadd.f32 0.0, %v504
    %506 = vmatmul.bf16.gmra.mxu0 %v490
    %v507 = vpop.f32.mrf.mxu0
    %v508 = vadd.f32 0.0, %v507
    %v509 = vpop.f32.mrf.mxu0
    %v510 = vadd.f32 0.0, %v509
    %511 = vdwg.mxu0
    %v512 = vpack.c.bf16 %v505, %v503
    %v513 = vpack.c.bf16 %v510, %v508
    %s514 = scalar_lea.vmem %s4, 128
    %v515 = vld [vmem:[%s514] sm:$0xf]
    %v516 = vld [vmem:[%s514 + $0x4] sm:$0xf]
    %v517 = vld [vmem:[%s514 + $0x8] sm:$0xf]
    %v518 = vld [vmem:[%s514 + $0xc] sm:$0xf]
    %v519 = vld [vmem:[%s514 + $0x10] sm:$0xf]
    %v520 = vld [vmem:[%s514 + $0x14] sm:$0xf]
    %v521 = vld [vmem:[%s514 + $0x18] sm:$0xf]
    %v522 = vld [vmem:[%s514 + $0x1c] sm:$0xf]
    %v523 = vld [vmem:[%s514 + $0x20] sm:$0xf]
    %v524 = vld [vmem:[%s514 + $0x24] sm:$0xf]
    %v525 = vld [vmem:[%s514 + $0x28] sm:$0xf]
    %v526 = vld [vmem:[%s514 + $0x2c] sm:$0xf]
    %v527 = vld [vmem:[%s514 + $0x30] sm:$0xf]
    %v528 = vld [vmem:[%s514 + $0x34] sm:$0xf]
    %v529 = vld [vmem:[%s514 + $0x38] sm:$0xf]
    %v530 = vld [vmem:[%s514 + $0x3c] sm:$0xf]
    %v547 = vunpack.c.l.b16 %v515
    %v548 = vunpack.c.l.b16 %v516
    %v549 = vunpack.c.l.b16 %v517
    %v550 = vunpack.c.l.b16 %v518
    %v551 = vunpack.c.l.b16 %v519
    %v552 = vunpack.c.l.b16 %v520
    %v553 = vunpack.c.l.b16 %v521
    %v554 = vunpack.c.l.b16 %v522
    %v555 = vunpack.c.l.b16 %v523
    %v556 = vunpack.c.l.b16 %v524
    %v557 = vunpack.c.l.b16 %v525
    %v558 = vunpack.c.l.b16 %v526
    %v559 = vunpack.c.l.b16 %v527
    %v560 = vunpack.c.l.b16 %v528
    %v561 = vunpack.c.l.b16 %v529
    %v562 = vunpack.c.l.b16 %v530
    %v563 = vpack.c.b16 %v548, %v547
    %v564 = vpack.c.b16 %v550, %v549
    %v565 = vpack.c.b16 %v552, %v551
    %v566 = vpack.c.b16 %v554, %v553
    %v567 = vpack.c.b16 %v556, %v555
    %v568 = vpack.c.b16 %v558, %v557
    %v569 = vpack.c.b16 %v560, %v559
    %v570 = vpack.c.b16 %v562, %v561
    %579 = vmatpush.bf16.msra.mxu0 %v570
    %580 = vmatpush.bf16.msra.mxu0 %v569
    %581 = vmatpush.bf16.msra.mxu0 %v568
    %582 = vmatpush.bf16.msra.mxu0 %v567
    %583 = vmatpush.bf16.msra.mxu0 %v566
    %584 = vmatpush.bf16.msra.mxu0 %v565
    %585 = vmatpush.bf16.msra.mxu0 %v564
    %586 = vmatpush.bf16.msra.mxu0 %v563
    %587 = vmatmul.bf16.gmra.mxu0 %v512
    %v588 = vpop.f32.mrf.mxu0
    %v589 = vadd.f32 0.0, %v588
    %v590 = vpop.f32.mrf.mxu0
    %v591 = vadd.f32 0.0, %v590
    %592 = vmatmul.bf16.gmra.mxu0 %v513
    %v593 = vpop.f32.mrf.mxu0
    %v594 = vadd.f32 0.0, %v593
    %v595 = vpop.f32.mrf.mxu0
    %v596 = vadd.f32 0.0, %v595
    %597 = vdwg.mxu0
    %v598 = vadd.f32 %v467, %v589
    %v599 = vadd.f32 %v469, %v591
    %v600 = vadd.f32 %v472, %v594
    %v601 = vadd.f32 %v474, %v596
    %s602 = scalar_lea.vmem %s3, 48
    %v603 = vld [vmem:[%s602] sm:$0xf]
    %v604 = vld [vmem:[%s602 + $0x4] sm:$0xf]
    %v605 = vld [vmem:[%s602 + $0x8] sm:$0xf]
    %v606 = vld [vmem:[%s602 + $0xc] sm:$0xf]
    %v611 = vunpack.c.l.b16 %v603
    %v612 = vunpack.c.l.b16 %v604
    %v613 = vunpack.c.l.b16 %v605
    %v614 = vunpack.c.l.b16 %v606
    %v615 = vpack.c.b16 %v612, %v611
    %v616 = vpack.c.b16 %v614, %v613
    %619 = vmatpush.bf16.msra.mxu0 %v233
    %620 = vmatpush.bf16.msra.mxu0 %v232
    %621 = vmatpush.bf16.msra.mxu0 %v231
    %622 = vmatpush.bf16.msra.mxu0 %v230
    %623 = vmatpush.bf16.msra.mxu0 %v229
    %624 = vmatpush.bf16.msra.mxu0 %v228
    %625 = vmatpush.bf16.msra.mxu0 %v227
    %626 = vmatpush.bf16.msra.mxu0 %v226
    %627 = vmatmul.bf16.gmra.mxu0 %v615
    %v628 = vpop.f32.mrf.mxu0
    %v629 = vadd.f32 0.0, %v628
    %v630 = vpop.f32.mrf.mxu0
    %v631 = vadd.f32 0.0, %v630
    %632 = vmatmul.bf16.gmra.mxu0 %v616
    %v633 = vpop.f32.mrf.mxu0
    %v634 = vadd.f32 0.0, %v633
    %v635 = vpop.f32.mrf.mxu0
    %v636 = vadd.f32 0.0, %v635
    %637 = vdwg.mxu0
    %v638 = vpack.c.bf16 %v631, %v629
    %v639 = vpack.c.bf16 %v636, %v634
    %s640 = scalar_lea.vmem %s4, 192
    %v641 = vld [vmem:[%s640] sm:$0xf]
    %v642 = vld [vmem:[%s640 + $0x4] sm:$0xf]
    %v643 = vld [vmem:[%s640 + $0x8] sm:$0xf]
    %v644 = vld [vmem:[%s640 + $0xc] sm:$0xf]
    %v645 = vld [vmem:[%s640 + $0x10] sm:$0xf]
    %v646 = vld [vmem:[%s640 + $0x14] sm:$0xf]
    %v647 = vld [vmem:[%s640 + $0x18] sm:$0xf]
    %v648 = vld [vmem:[%s640 + $0x1c] sm:$0xf]
    %v649 = vld [vmem:[%s640 + $0x20] sm:$0xf]
    %v650 = vld [vmem:[%s640 + $0x24] sm:$0xf]
    %v651 = vld [vmem:[%s640 + $0x28] sm:$0xf]
    %v652 = vld [vmem:[%s640 + $0x2c] sm:$0xf]
    %v653 = vld [vmem:[%s640 + $0x30] sm:$0xf]
    %v654 = vld [vmem:[%s640 + $0x34] sm:$0xf]
    %v655 = vld [vmem:[%s640 + $0x38] sm:$0xf]
    %v656 = vld [vmem:[%s640 + $0x3c] sm:$0xf]
    %v673 = vunpack.c.l.b16 %v641
    %v674 = vunpack.c.l.b16 %v642
    %v675 = vunpack.c.l.b16 %v643
    %v676 = vunpack.c.l.b16 %v644
    %v677 = vunpack.c.l.b16 %v645
    %v678 = vunpack.c.l.b16 %v646
    %v679 = vunpack.c.l.b16 %v647
    %v680 = vunpack.c.l.b16 %v648
    %v681 = vunpack.c.l.b16 %v649
    %v682 = vunpack.c.l.b16 %v650
    %v683 = vunpack.c.l.b16 %v651
    %v684 = vunpack.c.l.b16 %v652
    %v685 = vunpack.c.l.b16 %v653
    %v686 = vunpack.c.l.b16 %v654
    %v687 = vunpack.c.l.b16 %v655
    %v688 = vunpack.c.l.b16 %v656
    %v689 = vpack.c.b16 %v674, %v673
    %v690 = vpack.c.b16 %v676, %v675
    %v691 = vpack.c.b16 %v678, %v677
    %v692 = vpack.c.b16 %v680, %v679
    %v693 = vpack.c.b16 %v682, %v681
    %v694 = vpack.c.b16 %v684, %v683
    %v695 = vpack.c.b16 %v686, %v685
    %v696 = vpack.c.b16 %v688, %v687
    %705 = vmatpush.bf16.msra.mxu0 %v696
    %706 = vmatpush.bf16.msra.mxu0 %v695
    %707 = vmatpush.bf16.msra.mxu0 %v694
    %708 = vmatpush.bf16.msra.mxu0 %v693
    %709 = vmatpush.bf16.msra.mxu0 %v692
    %710 = vmatpush.bf16.msra.mxu0 %v691
    %711 = vmatpush.bf16.msra.mxu0 %v690
    %712 = vmatpush.bf16.msra.mxu0 %v689
    %713 = vmatmul.bf16.gmra.mxu0 %v638
    %v714 = vpop.f32.mrf.mxu0
    %v715 = vadd.f32 0.0, %v714
    %v716 = vpop.f32.mrf.mxu0
    %v717 = vadd.f32 0.0, %v716
    %718 = vmatmul.bf16.gmra.mxu0 %v639
    %v719 = vpop.f32.mrf.mxu0
    %v720 = vadd.f32 0.0, %v719
    %v721 = vpop.f32.mrf.mxu0
    %v722 = vadd.f32 0.0, %v721
    %723 = vdwg.mxu0
    %v724 = vadd.f32 %v598, %v715
    %v725 = vadd.f32 %v599, %v717
    %v726 = vadd.f32 %v600, %v720
    %v727 = vadd.f32 %v601, %v722
    %s728 = scalar_lea.vmem %s3, 64
    %v729 = vld [vmem:[%s728] sm:$0xf]
    %v730 = vld [vmem:[%s728 + $0x4] sm:$0xf]
    %v731 = vld [vmem:[%s728 + $0x8] sm:$0xf]
    %v732 = vld [vmem:[%s728 + $0xc] sm:$0xf]
    %v737 = vunpack.c.l.b16 %v729
    %v738 = vunpack.c.l.b16 %v730
    %v739 = vunpack.c.l.b16 %v731
    %v740 = vunpack.c.l.b16 %v732
    %v741 = vpack.c.b16 %v738, %v737
    %v742 = vpack.c.b16 %v740, %v739
    %745 = vmatpush.bf16.msra.mxu0 %v233
    %746 = vmatpush.bf16.msra.mxu0 %v232
    %747 = vmatpush.bf16.msra.mxu0 %v231
    %748 = vmatpush.bf16.msra.mxu0 %v230
    %749 = vmatpush.bf16.msra.mxu0 %v229
    %750 = vmatpush.bf16.msra.mxu0 %v228
    %751 = vmatpush.bf16.msra.mxu0 %v227
    %752 = vmatpush.bf16.msra.mxu0 %v226
    %753 = vmatmul.bf16.gmra.mxu0 %v741
    %v754 = vpop.f32.mrf.mxu0
    %v755 = vadd.f32 0.0, %v754
    %v756 = vpop.f32.mrf.mxu0
    %v757 = vadd.f32 0.0, %v756
    %758 = vmatmul.bf16.gmra.mxu0 %v742
    %v759 = vpop.f32.mrf.mxu0
    %v760 = vadd.f32 0.0, %v759
    %v761 = vpop.f32.mrf.mxu0
    %v762 = vadd.f32 0.0, %v761
    %763 = vdwg.mxu0
    %v764 = vpack.c.bf16 %v757, %v755
    %v765 = vpack.c.bf16 %v762, %v760
    %s766 = scalar_lea.vmem %s4, 256
    %v767 = vld [vmem:[%s766] sm:$0xf]
    %v768 = vld [vmem:[%s766 + $0x4] sm:$0xf]
    %v769 = vld [vmem:[%s766 + $0x8] sm:$0xf]
    %v770 = vld [vmem:[%s766 + $0xc] sm:$0xf]
    %v771 = vld [vmem:[%s766 + $0x10] sm:$0xf]
    %v772 = vld [vmem:[%s766 + $0x14] sm:$0xf]
    %v773 = vld [vmem:[%s766 + $0x18] sm:$0xf]
    %v774 = vld [vmem:[%s766 + $0x1c] sm:$0xf]
    %v775 = vld [vmem:[%s766 + $0x20] sm:$0xf]
    %v776 = vld [vmem:[%s766 + $0x24] sm:$0xf]
    %v777 = vld [vmem:[%s766 + $0x28] sm:$0xf]
    %v778 = vld [vmem:[%s766 + $0x2c] sm:$0xf]
    %v779 = vld [vmem:[%s766 + $0x30] sm:$0xf]
    %v780 = vld [vmem:[%s766 + $0x34] sm:$0xf]
    %v781 = vld [vmem:[%s766 + $0x38] sm:$0xf]
    %v782 = vld [vmem:[%s766 + $0x3c] sm:$0xf]
    %v799 = vunpack.c.l.b16 %v767
    %v800 = vunpack.c.l.b16 %v768
    %v801 = vunpack.c.l.b16 %v769
    %v802 = vunpack.c.l.b16 %v770
    %v803 = vunpack.c.l.b16 %v771
    %v804 = vunpack.c.l.b16 %v772
    %v805 = vunpack.c.l.b16 %v773
    %v806 = vunpack.c.l.b16 %v774
    %v807 = vunpack.c.l.b16 %v775
    %v808 = vunpack.c.l.b16 %v776
    %v809 = vunpack.c.l.b16 %v777
    %v810 = vunpack.c.l.b16 %v778
    %v811 = vunpack.c.l.b16 %v779
    %v812 = vunpack.c.l.b16 %v780
    %v813 = vunpack.c.l.b16 %v781
    %v814 = vunpack.c.l.b16 %v782
    %v815 = vpack.c.b16 %v800, %v799
    %v816 = vpack.c.b16 %v802, %v801
    %v817 = vpack.c.b16 %v804, %v803
    %v818 = vpack.c.b16 %v806, %v805
    %v819 = vpack.c.b16 %v808, %v807
    %v820 = vpack.c.b16 %v810, %v809
    %v821 = vpack.c.b16 %v812, %v811
    %v822 = vpack.c.b16 %v814, %v813
    %831 = vmatpush.bf16.msra.mxu0 %v822
    %832 = vmatpush.bf16.msra.mxu0 %v821
    %833 = vmatpush.bf16.msra.mxu0 %v820
    %834 = vmatpush.bf16.msra.mxu0 %v819
    %835 = vmatpush.bf16.msra.mxu0 %v818
    %836 = vmatpush.bf16.msra.mxu0 %v817
    %837 = vmatpush.bf16.msra.mxu0 %v816
    %838 = vmatpush.bf16.msra.mxu0 %v815
    %839 = vmatmul.bf16.gmra.mxu0 %v764
    %v840 = vpop.f32.mrf.mxu0
    %v841 = vadd.f32 0.0, %v840
    %v842 = vpop.f32.mrf.mxu0
    %v843 = vadd.f32 0.0, %v842
    %844 = vmatmul.bf16.gmra.mxu0 %v765
    %v845 = vpop.f32.mrf.mxu0
    %v846 = vadd.f32 0.0, %v845
    %v847 = vpop.f32.mrf.mxu0
    %v848 = vadd.f32 0.0, %v847
    %849 = vdwg.mxu0
    %v850 = vadd.f32 %v724, %v841
    %v851 = vadd.f32 %v725, %v843
    %v852 = vadd.f32 %v726, %v846
    %v853 = vadd.f32 %v727, %v848
    %s854 = scalar_lea.vmem %s3, 80
    %v855 = vld [vmem:[%s854] sm:$0xf]
    %v856 = vld [vmem:[%s854 + $0x4] sm:$0xf]
    %v857 = vld [vmem:[%s854 + $0x8] sm:$0xf]
    %v858 = vld [vmem:[%s854 + $0xc] sm:$0xf]
    %v863 = vunpack.c.l.b16 %v855
    %v864 = vunpack.c.l.b16 %v856
    %v865 = vunpack.c.l.b16 %v857
    %v866 = vunpack.c.l.b16 %v858
    %v867 = vpack.c.b16 %v864, %v863
    %v868 = vpack.c.b16 %v866, %v865
    %871 = vmatpush.bf16.msra.mxu0 %v233
    %872 = vmatpush.bf16.msra.mxu0 %v232
    %873 = vmatpush.bf16.msra.mxu0 %v231
    %874 = vmatpush.bf16.msra.mxu0 %v230
    %875 = vmatpush.bf16.msra.mxu0 %v229
    %876 = vmatpush.bf16.msra.mxu0 %v228
    %877 = vmatpush.bf16.msra.mxu0 %v227
    %878 = vmatpush.bf16.msra.mxu0 %v226
    %879 = vmatmul.bf16.gmra.mxu0 %v867
    %v880 = vpop.f32.mrf.mxu0
    %v881 = vadd.f32 0.0, %v880
    %v882 = vpop.f32.mrf.mxu0
    %v883 = vadd.f32 0.0, %v882
    %884 = vmatmul.bf16.gmra.mxu0 %v868
    %v885 = vpop.f32.mrf.mxu0
    %v886 = vadd.f32 0.0, %v885
    %v887 = vpop.f32.mrf.mxu0
    %v888 = vadd.f32 0.0, %v887
    %889 = vdwg.mxu0
    %v890 = vpack.c.bf16 %v883, %v881
    %v891 = vpack.c.bf16 %v888, %v886
    %s892 = scalar_lea.vmem %s4, 320
    %v893 = vld [vmem:[%s892] sm:$0xf]
    %v894 = vld [vmem:[%s892 + $0x4] sm:$0xf]
    %v895 = vld [vmem:[%s892 + $0x8] sm:$0xf]
    %v896 = vld [vmem:[%s892 + $0xc] sm:$0xf]
    %v897 = vld [vmem:[%s892 + $0x10] sm:$0xf]
    %v898 = vld [vmem:[%s892 + $0x14] sm:$0xf]
    %v899 = vld [vmem:[%s892 + $0x18] sm:$0xf]
    %v900 = vld [vmem:[%s892 + $0x1c] sm:$0xf]
    %v901 = vld [vmem:[%s892 + $0x20] sm:$0xf]
    %v902 = vld [vmem:[%s892 + $0x24] sm:$0xf]
    %v903 = vld [vmem:[%s892 + $0x28] sm:$0xf]
    %v904 = vld [vmem:[%s892 + $0x2c] sm:$0xf]
    %v905 = vld [vmem:[%s892 + $0x30] sm:$0xf]
    %v906 = vld [vmem:[%s892 + $0x34] sm:$0xf]
    %v907 = vld [vmem:[%s892 + $0x38] sm:$0xf]
    %v908 = vld [vmem:[%s892 + $0x3c] sm:$0xf]
    %v925 = vunpack.c.l.b16 %v893
    %v926 = vunpack.c.l.b16 %v894
    %v927 = vunpack.c.l.b16 %v895
    %v928 = vunpack.c.l.b16 %v896
    %v929 = vunpack.c.l.b16 %v897
    %v930 = vunpack.c.l.b16 %v898
    %v931 = vunpack.c.l.b16 %v899
    %v932 = vunpack.c.l.b16 %v900
    %v933 = vunpack.c.l.b16 %v901
    %v934 = vunpack.c.l.b16 %v902
    %v935 = vunpack.c.l.b16 %v903
    %v936 = vunpack.c.l.b16 %v904
    %v937 = vunpack.c.l.b16 %v905
    %v938 = vunpack.c.l.b16 %v906
    %v939 = vunpack.c.l.b16 %v907
    %v940 = vunpack.c.l.b16 %v908
    %v941 = vpack.c.b16 %v926, %v925
    %v942 = vpack.c.b16 %v928, %v927
    %v943 = vpack.c.b16 %v930, %v929
    %v944 = vpack.c.b16 %v932, %v931
    %v945 = vpack.c.b16 %v934, %v933
    %v946 = vpack.c.b16 %v936, %v935
    %v947 = vpack.c.b16 %v938, %v937
    %v948 = vpack.c.b16 %v940, %v939
    %957 = vmatpush.bf16.msra.mxu0 %v948
    %958 = vmatpush.bf16.msra.mxu0 %v947
    %959 = vmatpush.bf16.msra.mxu0 %v946
    %960 = vmatpush.bf16.msra.mxu0 %v945
    %961 = vmatpush.bf16.msra.mxu0 %v944
    %962 = vmatpush.bf16.msra.mxu0 %v943
    %963 = vmatpush.bf16.msra.mxu0 %v942
    %964 = vmatpush.bf16.msra.mxu0 %v941
    %965 = vmatmul.bf16.gmra.mxu0 %v890
    %v966 = vpop.f32.mrf.mxu0
    %v967 = vadd.f32 0.0, %v966
    %v968 = vpop.f32.mrf.mxu0
    %v969 = vadd.f32 0.0, %v968
    %970 = vmatmul.bf16.gmra.mxu0 %v891
    %v971 = vpop.f32.mrf.mxu0
    %v972 = vadd.f32 0.0, %v971
    %v973 = vpop.f32.mrf.mxu0
    %v974 = vadd.f32 0.0, %v973
    %975 = vdwg.mxu0
    %v976 = vadd.f32 %v850, %v967
    %v977 = vadd.f32 %v851, %v969
    %v978 = vadd.f32 %v852, %v972
    %v979 = vadd.f32 %v853, %v974
    %s980 = scalar_lea.vmem %s3, 96
    %v981 = vld [vmem:[%s980] sm:$0xf]
    %v982 = vld [vmem:[%s980 + $0x4] sm:$0xf]
    %v983 = vld [vmem:[%s980 + $0x8] sm:$0xf]
    %v984 = vld [vmem:[%s980 + $0xc] sm:$0xf]
    %v989 = vunpack.c.l.b16 %v981
    %v990 = vunpack.c.l.b16 %v982
    %v991 = vunpack.c.l.b16 %v983
    %v992 = vunpack.c.l.b16 %v984
    %v993 = vpack.c.b16 %v990, %v989
    %v994 = vpack.c.b16 %v992, %v991
    %997 = vmatpush.bf16.msra.mxu0 %v233
    %998 = vmatpush.bf16.msra.mxu0 %v232
    %999 = vmatpush.bf16.msra.mxu0 %v231
    %1000 = vmatpush.bf16.msra.mxu0 %v230
    %1001 = vmatpush.bf16.msra.mxu0 %v229
    %1002 = vmatpush.bf16.msra.mxu0 %v228
    %1003 = vmatpush.bf16.msra.mxu0 %v227
    %1004 = vmatpush.bf16.msra.mxu0 %v226
    %1005 = vmatmul.bf16.gmra.mxu0 %v993
    %v1006 = vpop.f32.mrf.mxu0
    %v1007 = vadd.f32 0.0, %v1006
    %v1008 = vpop.f32.mrf.mxu0
    %v1009 = vadd.f32 0.0, %v1008
    %1010 = vmatmul.bf16.gmra.mxu0 %v994
    %v1011 = vpop.f32.mrf.mxu0
    %v1012 = vadd.f32 0.0, %v1011
    %v1013 = vpop.f32.mrf.mxu0
    %v1014 = vadd.f32 0.0, %v1013
    %1015 = vdwg.mxu0
    %v1016 = vpack.c.bf16 %v1009, %v1007
    %v1017 = vpack.c.bf16 %v1014, %v1012
    %s1018 = scalar_lea.vmem %s4, 384
    %v1019 = vld [vmem:[%s1018] sm:$0xf]
    %v1020 = vld [vmem:[%s1018 + $0x4] sm:$0xf]
    %v1021 = vld [vmem:[%s1018 + $0x8] sm:$0xf]
    %v1022 = vld [vmem:[%s1018 + $0xc] sm:$0xf]
    %v1023 = vld [vmem:[%s1018 + $0x10] sm:$0xf]
    %v1024 = vld [vmem:[%s1018 + $0x14] sm:$0xf]
    %v1025 = vld [vmem:[%s1018 + $0x18] sm:$0xf]
    %v1026 = vld [vmem:[%s1018 + $0x1c] sm:$0xf]
    %v1027 = vld [vmem:[%s1018 + $0x20] sm:$0xf]
    %v1028 = vld [vmem:[%s1018 + $0x24] sm:$0xf]
    %v1029 = vld [vmem:[%s1018 + $0x28] sm:$0xf]
    %v1030 = vld [vmem:[%s1018 + $0x2c] sm:$0xf]
    %v1031 = vld [vmem:[%s1018 + $0x30] sm:$0xf]
    %v1032 = vld [vmem:[%s1018 + $0x34] sm:$0xf]
    %v1033 = vld [vmem:[%s1018 + $0x38] sm:$0xf]
    %v1034 = vld [vmem:[%s1018 + $0x3c] sm:$0xf]
    %v1051 = vunpack.c.l.b16 %v1019
    %v1052 = vunpack.c.l.b16 %v1020
    %v1053 = vunpack.c.l.b16 %v1021
    %v1054 = vunpack.c.l.b16 %v1022
    %v1055 = vunpack.c.l.b16 %v1023
    %v1056 = vunpack.c.l.b16 %v1024
    %v1057 = vunpack.c.l.b16 %v1025
    %v1058 = vunpack.c.l.b16 %v1026
    %v1059 = vunpack.c.l.b16 %v1027
    %v1060 = vunpack.c.l.b16 %v1028
    %v1061 = vunpack.c.l.b16 %v1029
    %v1062 = vunpack.c.l.b16 %v1030
    %v1063 = vunpack.c.l.b16 %v1031
    %v1064 = vunpack.c.l.b16 %v1032
    %v1065 = vunpack.c.l.b16 %v1033
    %v1066 = vunpack.c.l.b16 %v1034
    %v1067 = vpack.c.b16 %v1052, %v1051
    %v1068 = vpack.c.b16 %v1054, %v1053
    %v1069 = vpack.c.b16 %v1056, %v1055
    %v1070 = vpack.c.b16 %v1058, %v1057
    %v1071 = vpack.c.b16 %v1060, %v1059
    %v1072 = vpack.c.b16 %v1062, %v1061
    %v1073 = vpack.c.b16 %v1064, %v1063
    %v1074 = vpack.c.b16 %v1066, %v1065
    %1083 = vmatpush.bf16.msra.mxu0 %v1074
    %1084 = vmatpush.bf16.msra.mxu0 %v1073
    %1085 = vmatpush.bf16.msra.mxu0 %v1072
    %1086 = vmatpush.bf16.msra.mxu0 %v1071
    %1087 = vmatpush.bf16.msra.mxu0 %v1070
    %1088 = vmatpush.bf16.msra.mxu0 %v1069
    %1089 = vmatpush.bf16.msra.mxu0 %v1068
    %1090 = vmatpush.bf16.msra.mxu0 %v1067
    %1091 = vmatmul.bf16.gmra.mxu0 %v1016
    %v1092 = vpop.f32.mrf.mxu0
    %v1093 = vadd.f32 0.0, %v1092
    %v1094 = vpop.f32.mrf.mxu0
    %v1095 = vadd.f32 0.0, %v1094
    %1096 = vmatmul.bf16.gmra.mxu0 %v1017
    %v1097 = vpop.f32.mrf.mxu0
    %v1098 = vadd.f32 0.0, %v1097
    %v1099 = vpop.f32.mrf.mxu0
    %v1100 = vadd.f32 0.0, %v1099
    %1101 = vdwg.mxu0
    %v1102 = vadd.f32 %v976, %v1093
    %v1103 = vadd.f32 %v977, %v1095
    %v1104 = vadd.f32 %v978, %v1098
    %v1105 = vadd.f32 %v979, %v1100
    %s1106 = scalar_lea.vmem %s3, 112
    %v1107 = vld [vmem:[%s1106] sm:$0xf]
    %v1108 = vld [vmem:[%s1106 + $0x4] sm:$0xf]
    %v1109 = vld [vmem:[%s1106 + $0x8] sm:$0xf]
    %v1110 = vld [vmem:[%s1106 + $0xc] sm:$0xf]
    %v1115 = vunpack.c.l.b16 %v1107
    %v1116 = vunpack.c.l.b16 %v1108
    %v1117 = vunpack.c.l.b16 %v1109
    %v1118 = vunpack.c.l.b16 %v1110
    %v1119 = vpack.c.b16 %v1116, %v1115
    %v1120 = vpack.c.b16 %v1118, %v1117
    %1123 = vmatpush.bf16.msra.mxu0 %v233
    %1124 = vmatpush.bf16.msra.mxu0 %v232
    %1125 = vmatpush.bf16.msra.mxu0 %v231
    %1126 = vmatpush.bf16.msra.mxu0 %v230
    %1127 = vmatpush.bf16.msra.mxu0 %v229
    %1128 = vmatpush.bf16.msra.mxu0 %v228
    %1129 = vmatpush.bf16.msra.mxu0 %v227
    %1130 = vmatpush.bf16.msra.mxu0 %v226
    %1131 = vmatmul.bf16.gmra.mxu0 %v1119
    %v1132 = vpop.f32.mrf.mxu0
    %v1133 = vadd.f32 0.0, %v1132
    %v1134 = vpop.f32.mrf.mxu0
    %v1135 = vadd.f32 0.0, %v1134
    %1136 = vmatmul.bf16.gmra.mxu0 %v1120
    %v1137 = vpop.f32.mrf.mxu0
    %v1138 = vadd.f32 0.0, %v1137
    %v1139 = vpop.f32.mrf.mxu0
    %v1140 = vadd.f32 0.0, %v1139
    %1141 = vdwg.mxu0
    %v1142 = vpack.c.bf16 %v1135, %v1133
    %v1143 = vpack.c.bf16 %v1140, %v1138
    %s1144 = scalar_lea.vmem %s4, 448
    %v1145 = vld [vmem:[%s1144] sm:$0xf]
    %v1146 = vld [vmem:[%s1144 + $0x4] sm:$0xf]
    %v1147 = vld [vmem:[%s1144 + $0x8] sm:$0xf]
    %v1148 = vld [vmem:[%s1144 + $0xc] sm:$0xf]
    %v1149 = vld [vmem:[%s1144 + $0x10] sm:$0xf]
    %v1150 = vld [vmem:[%s1144 + $0x14] sm:$0xf]
    %v1151 = vld [vmem:[%s1144 + $0x18] sm:$0xf]
    %v1152 = vld [vmem:[%s1144 + $0x1c] sm:$0xf]
    %v1153 = vld [vmem:[%s1144 + $0x20] sm:$0xf]
    %v1154 = vld [vmem:[%s1144 + $0x24] sm:$0xf]
    %v1155 = vld [vmem:[%s1144 + $0x28] sm:$0xf]
    %v1156 = vld [vmem:[%s1144 + $0x2c] sm:$0xf]
    %v1157 = vld [vmem:[%s1144 + $0x30] sm:$0xf]
    %v1158 = vld [vmem:[%s1144 + $0x34] sm:$0xf]
    %v1159 = vld [vmem:[%s1144 + $0x38] sm:$0xf]
    %v1160 = vld [vmem:[%s1144 + $0x3c] sm:$0xf]
    %v1177 = vunpack.c.l.b16 %v1145
    %v1178 = vunpack.c.l.b16 %v1146
    %v1179 = vunpack.c.l.b16 %v1147
    %v1180 = vunpack.c.l.b16 %v1148
    %v1181 = vunpack.c.l.b16 %v1149
    %v1182 = vunpack.c.l.b16 %v1150
    %v1183 = vunpack.c.l.b16 %v1151
    %v1184 = vunpack.c.l.b16 %v1152
    %v1185 = vunpack.c.l.b16 %v1153
    %v1186 = vunpack.c.l.b16 %v1154
    %v1187 = vunpack.c.l.b16 %v1155
    %v1188 = vunpack.c.l.b16 %v1156
    %v1189 = vunpack.c.l.b16 %v1157
    %v1190 = vunpack.c.l.b16 %v1158
    %v1191 = vunpack.c.l.b16 %v1159
    %v1192 = vunpack.c.l.b16 %v1160
    %v1193 = vpack.c.b16 %v1178, %v1177
    %v1194 = vpack.c.b16 %v1180, %v1179
    %v1195 = vpack.c.b16 %v1182, %v1181
    %v1196 = vpack.c.b16 %v1184, %v1183
    %v1197 = vpack.c.b16 %v1186, %v1185
    %v1198 = vpack.c.b16 %v1188, %v1187
    %v1199 = vpack.c.b16 %v1190, %v1189
    %v1200 = vpack.c.b16 %v1192, %v1191
    %1209 = vmatpush.bf16.msra.mxu0 %v1200
    %1210 = vmatpush.bf16.msra.mxu0 %v1199
    %1211 = vmatpush.bf16.msra.mxu0 %v1198
    %1212 = vmatpush.bf16.msra.mxu0 %v1197
    %1213 = vmatpush.bf16.msra.mxu0 %v1196
    %1214 = vmatpush.bf16.msra.mxu0 %v1195
    %1215 = vmatpush.bf16.msra.mxu0 %v1194
    %1216 = vmatpush.bf16.msra.mxu0 %v1193
    %1217 = vmatmul.bf16.gmra.mxu0 %v1142
    %v1218 = vpop.f32.mrf.mxu0
    %v1219 = vadd.f32 0.0, %v1218
    %v1220 = vpop.f32.mrf.mxu0
    %v1221 = vadd.f32 0.0, %v1220
    %1222 = vmatmul.bf16.gmra.mxu0 %v1143
    %v1223 = vpop.f32.mrf.mxu0
    %v1224 = vadd.f32 0.0, %v1223
    %v1225 = vpop.f32.mrf.mxu0
    %v1226 = vadd.f32 0.0, %v1225
    %1227 = vdwg.mxu0
    %v1228 = vadd.f32 %v1102, %v1219
    %v1229 = vadd.f32 %v1103, %v1221
    %v1230 = vadd.f32 %v1104, %v1224
    %v1231 = vadd.f32 %v1105, %v1226
    %s1232 = scalar_lea.vmem %s3, 128
    %v1233 = vld [vmem:[%s1232] sm:$0xf]
    %v1234 = vld [vmem:[%s1232 + $0x4] sm:$0xf]
    %v1235 = vld [vmem:[%s1232 + $0x8] sm:$0xf]
    %v1236 = vld [vmem:[%s1232 + $0xc] sm:$0xf]
    %v1241 = vunpack.c.l.b16 %v1233
    %v1242 = vunpack.c.l.b16 %v1234
    %v1243 = vunpack.c.l.b16 %v1235
    %v1244 = vunpack.c.l.b16 %v1236
    %v1245 = vpack.c.b16 %v1242, %v1241
    %v1246 = vpack.c.b16 %v1244, %v1243
    %1249 = vmatpush.bf16.msra.mxu0 %v233
    %1250 = vmatpush.bf16.msra.mxu0 %v232
    %1251 = vmatpush.bf16.msra.mxu0 %v231
    %1252 = vmatpush.bf16.msra.mxu0 %v230
    %1253 = vmatpush.bf16.msra.mxu0 %v229
    %1254 = vmatpush.bf16.msra.mxu0 %v228
    %1255 = vmatpush.bf16.msra.mxu0 %v227
    %1256 = vmatpush.bf16.msra.mxu0 %v226
    %1257 = vmatmul.bf16.gmra.mxu0 %v1245
    %v1258 = vpop.f32.mrf.mxu0
    %v1259 = vadd.f32 0.0, %v1258
    %v1260 = vpop.f32.mrf.mxu0
    %v1261 = vadd.f32 0.0, %v1260
    %1262 = vmatmul.bf16.gmra.mxu0 %v1246
    %v1263 = vpop.f32.mrf.mxu0
    %v1264 = vadd.f32 0.0, %v1263
    %v1265 = vpop.f32.mrf.mxu0
    %v1266 = vadd.f32 0.0, %v1265
    %1267 = vdwg.mxu0
    %v1268 = vpack.c.bf16 %v1261, %v1259
    %v1269 = vpack.c.bf16 %v1266, %v1264
    %s1270 = scalar_lea.vmem %s4, 512
    %v1271 = vld [vmem:[%s1270] sm:$0xf]
    %v1272 = vld [vmem:[%s1270 + $0x4] sm:$0xf]
    %v1273 = vld [vmem:[%s1270 + $0x8] sm:$0xf]
    %v1274 = vld [vmem:[%s1270 + $0xc] sm:$0xf]
    %v1275 = vld [vmem:[%s1270 + $0x10] sm:$0xf]
    %v1276 = vld [vmem:[%s1270 + $0x14] sm:$0xf]
    %v1277 = vld [vmem:[%s1270 + $0x18] sm:$0xf]
    %v1278 = vld [vmem:[%s1270 + $0x1c] sm:$0xf]
    %v1279 = vld [vmem:[%s1270 + $0x20] sm:$0xf]
    %v1280 = vld [vmem:[%s1270 + $0x24] sm:$0xf]
    %v1281 = vld [vmem:[%s1270 + $0x28] sm:$0xf]
    %v1282 = vld [vmem:[%s1270 + $0x2c] sm:$0xf]
    %v1283 = vld [vmem:[%s1270 + $0x30] sm:$0xf]
    %v1284 = vld [vmem:[%s1270 + $0x34] sm:$0xf]
    %v1285 = vld [vmem:[%s1270 + $0x38] sm:$0xf]
    %v1286 = vld [vmem:[%s1270 + $0x3c] sm:$0xf]
    %v1303 = vunpack.c.l.b16 %v1271
    %v1304 = vunpack.c.l.b16 %v1272
    %v1305 = vunpack.c.l.b16 %v1273
    %v1306 = vunpack.c.l.b16 %v1274
    %v1307 = vunpack.c.l.b16 %v1275
    %v1308 = vunpack.c.l.b16 %v1276
    %v1309 = vunpack.c.l.b16 %v1277
    %v1310 = vunpack.c.l.b16 %v1278
    %v1311 = vunpack.c.l.b16 %v1279
    %v1312 = vunpack.c.l.b16 %v1280
    %v1313 = vunpack.c.l.b16 %v1281
    %v1314 = vunpack.c.l.b16 %v1282
    %v1315 = vunpack.c.l.b16 %v1283
    %v1316 = vunpack.c.l.b16 %v1284
    %v1317 = vunpack.c.l.b16 %v1285
    %v1318 = vunpack.c.l.b16 %v1286
    %v1319 = vpack.c.b16 %v1304, %v1303
    %v1320 = vpack.c.b16 %v1306, %v1305
    %v1321 = vpack.c.b16 %v1308, %v1307
    %v1322 = vpack.c.b16 %v1310, %v1309
    %v1323 = vpack.c.b16 %v1312, %v1311
    %v1324 = vpack.c.b16 %v1314, %v1313
    %v1325 = vpack.c.b16 %v1316, %v1315
    %v1326 = vpack.c.b16 %v1318, %v1317
    %1335 = vmatpush.bf16.msra.mxu0 %v1326
    %1336 = vmatpush.bf16.msra.mxu0 %v1325
    %1337 = vmatpush.bf16.msra.mxu0 %v1324
    %1338 = vmatpush.bf16.msra.mxu0 %v1323
    %1339 = vmatpush.bf16.msra.mxu0 %v1322
    %1340 = vmatpush.bf16.msra.mxu0 %v1321
    %1341 = vmatpush.bf16.msra.mxu0 %v1320
    %1342 = vmatpush.bf16.msra.mxu0 %v1319
    %1343 = vmatmul.bf16.gmra.mxu0 %v1268
    %v1344 = vpop.f32.mrf.mxu0
    %v1345 = vadd.f32 0.0, %v1344
    %v1346 = vpop.f32.mrf.mxu0
    %v1347 = vadd.f32 0.0, %v1346
    %1348 = vmatmul.bf16.gmra.mxu0 %v1269
    %v1349 = vpop.f32.mrf.mxu0
    %v1350 = vadd.f32 0.0, %v1349
    %v1351 = vpop.f32.mrf.mxu0
    %v1352 = vadd.f32 0.0, %v1351
    %1353 = vdwg.mxu0
    %v1354 = vadd.f32 %v1228, %v1345
    %v1355 = vadd.f32 %v1229, %v1347
    %v1356 = vadd.f32 %v1230, %v1350
    %v1357 = vadd.f32 %v1231, %v1352
    %v1358 = vld [vmem:[%s5] sm:$0x1]
    %v1360 = vperm.slane %v1358, 0
    %v1362 = vadd.f32 %v1354, %v1360
    %v1363 = vadd.f32 %v1355, %v1360
    %v1364 = vadd.f32 %v1356, %v1360
    %v1365 = vadd.f32 %v1357, %v1360
    %v1366 = vmax.f32 %v1362, 0.0
    %v1367 = vmax.f32 %v1363, 0.0
    %v1368 = vmax.f32 %v1364, 0.0
    %v1369 = vmax.f32 %v1365, 0.0
    %1370 = vst [vmem:[#allocation4] sm:$0xff] %v1366
    %1371 = vst [vmem:[#allocation4 + $0x8] sm:$0xff] %v1367
    %1372 = vst [vmem:[#allocation4 + $0x10] sm:$0xff] %v1368
    %1373 = vst [vmem:[#allocation4 + $0x18] sm:$0xff] %v1369
    %v1374 = vpack.c.bf16 %v1367, %v1366
    %v1375 = vpack.c.bf16 %v1369, %v1368
    %v1376 = vld [vmem:[%s6] sm:$0xf]
    %vm1377 = vcmask 261120
    %v1379 = vsel %vm1377, %v1376, 0
    %1381 = vmatpush.bf16.msra.mxu0 0
    %1382 = vmatpush.bf16.msra.mxu0 0
    %1383 = vmatpush.bf16.msra.mxu0 0
    %1384 = vmatpush.bf16.msra.mxu0 0
    %1385 = vmatpush.bf16.msra.mxu0 0
    %1386 = vmatpush.bf16.msra.mxu0 0
    %1387 = vmatpush.bf16.msra.mxu0 %v1375
    %1388 = vmatpush.bf16.msra.mxu0 %v1374
    %1389 = vmatmul.bf16.gmra.mxu0 %v1379
    %v1390 = vpop.f32.mrf.mxu0
    %v1391 = vadd.f32 0.0, %v1390
    %v1392 = vpop.f32.mrf.mxu0
    %1393 = vdwg.mxu0
    %v1394 = vpack.c.bf16 %v1391, %v1391
    %v1395 = vld [vmem:[%s7] sm:$0xf]
    %v1396 = vld [vmem:[%s7 + $0x4] sm:$0xf]
    %v1397 = vld [vmem:[%s7 + $0x8] sm:$0xf]
    %v1398 = vld [vmem:[%s7 + $0xc] sm:$0xf]
    %v1399 = vld [vmem:[%s7 + $0x10] sm:$0xf]
    %v1400 = vld [vmem:[%s7 + $0x14] sm:$0xf]
    %v1401 = vld [vmem:[%s7 + $0x18] sm:$0xf]
    %v1402 = vld [vmem:[%s7 + $0x1c] sm:$0xf]
    %v1403 = vld [vmem:[%s7 + $0x20] sm:$0xf]
    %v1404 = vld [vmem:[%s7 + $0x24] sm:$0xf]
    %v1405 = vld [vmem:[%s7 + $0x28] sm:$0xf]
    %v1406 = vld [vmem:[%s7 + $0x2c] sm:$0xf]
    %v1407 = vld [vmem:[%s7 + $0x30] sm:$0xf]
    %v1408 = vld [vmem:[%s7 + $0x34] sm:$0xf]
    %v1409 = vld [vmem:[%s7 + $0x38] sm:$0xf]
    %v1410 = vld [vmem:[%s7 + $0x3c] sm:$0xf]
    %s1411 = scalar_lea.vmem %s6, 4
    %v1412 = vld [vmem:[%s1411] sm:$0xf]
    %v1414 = vsel %vm1377, %v1412, 0
    %1416 = vmatpush.bf16.msra.mxu0 0
    %1417 = vmatpush.bf16.msra.mxu0 0
    %1418 = vmatpush.bf16.msra.mxu0 0
    %1419 = vmatpush.bf16.msra.mxu0 0
    %1420 = vmatpush.bf16.msra.mxu0 0
    %1421 = vmatpush.bf16.msra.mxu0 0
    %1422 = vmatpush.bf16.msra.mxu0 %v1375
    %1423 = vmatpush.bf16.msra.mxu0 %v1374
    %1424 = vmatmul.bf16.gmra.mxu0 %v1414
    %v1425 = vpop.f32.mrf.mxu0
    %v1426 = vadd.f32 0.0, %v1425
    %v1427 = vpop.f32.mrf.mxu0
    %1428 = vdwg.mxu0
    %v1429 = vpack.c.bf16 %v1426, %v1426
    %s1430 = scalar_lea.vmem %s7, 64
    %v1431 = vld [vmem:[%s1430] sm:$0xf]
    %v1432 = vld [vmem:[%s1430 + $0x4] sm:$0xf]
    %v1433 = vld [vmem:[%s1430 + $0x8] sm:$0xf]
    %v1434 = vld [vmem:[%s1430 + $0xc] sm:$0xf]
    %v1435 = vld [vmem:[%s1430 + $0x10] sm:$0xf]
    %v1436 = vld [vmem:[%s1430 + $0x14] sm:$0xf]
    %v1437 = vld [vmem:[%s1430 + $0x18] sm:$0xf]
    %v1438 = vld [vmem:[%s1430 + $0x1c] sm:$0xf]
    %v1439 = vld [vmem:[%s1430 + $0x20] sm:$0xf]
    %v1440 = vld [vmem:[%s1430 + $0x24] sm:$0xf]
    %v1441 = vld [vmem:[%s1430 + $0x28] sm:$0xf]
    %v1442 = vld [vmem:[%s1430 + $0x2c] sm:$0xf]
    %v1443 = vld [vmem:[%s1430 + $0x30] sm:$0xf]
    %v1444 = vld [vmem:[%s1430 + $0x34] sm:$0xf]
    %v1445 = vld [vmem:[%s1430 + $0x38] sm:$0xf]
    %v1446 = vld [vmem:[%s1430 + $0x3c] sm:$0xf]
    %v1463 = vunpack.c.l.b16 %v1431
    %v1464 = vunpack.c.l.b16 %v1432
    %v1465 = vunpack.c.l.b16 %v1433
    %v1466 = vunpack.c.l.b16 %v1434
    %v1467 = vunpack.c.l.b16 %v1435
    %v1468 = vunpack.c.l.b16 %v1436
    %v1469 = vunpack.c.l.b16 %v1437
    %v1470 = vunpack.c.l.b16 %v1438
    %v1471 = vunpack.c.l.b16 %v1439
    %v1472 = vunpack.c.l.b16 %v1440
    %v1473 = vunpack.c.l.b16 %v1441
    %v1474 = vunpack.c.l.b16 %v1442
    %v1475 = vunpack.c.l.b16 %v1443
    %v1476 = vunpack.c.l.b16 %v1444
    %v1477 = vunpack.c.l.b16 %v1445
    %v1478 = vunpack.c.l.b16 %v1446
    %v1479 = vpack.c.b16 %v1464, %v1463
    %v1480 = vpack.c.b16 %v1466, %v1465
    %v1481 = vpack.c.b16 %v1468, %v1467
    %v1482 = vpack.c.b16 %v1470, %v1469
    %v1483 = vpack.c.b16 %v1472, %v1471
    %v1484 = vpack.c.b16 %v1474, %v1473
    %v1485 = vpack.c.b16 %v1476, %v1475
    %v1486 = vpack.c.b16 %v1478, %v1477
    %1495 = vmatpush.bf16.msra.mxu0 %v1486
    %1496 = vmatpush.bf16.msra.mxu0 %v1485
    %1497 = vmatpush.bf16.msra.mxu0 %v1484
    %1498 = vmatpush.bf16.msra.mxu0 %v1483
    %1499 = vmatpush.bf16.msra.mxu0 %v1482
    %1500 = vmatpush.bf16.msra.mxu0 %v1481
    %1501 = vmatpush.bf16.msra.mxu0 %v1480
    %1502 = vmatpush.bf16.msra.mxu0 %v1479
    %1503 = vmatmul.bf16.gmra.mxu0 %v1429
    %v1504 = vpop.f32.mrf.mxu0
    %v1505 = vadd.f32 0.0, %v1504
    %v1506 = vpop.f32.mrf.mxu0
    %1507 = vdwg.mxu0
    %v1524 = vunpack.c.l.b16 %v1395
    %v1525 = vunpack.c.l.b16 %v1396
    %v1526 = vunpack.c.l.b16 %v1397
    %v1527 = vunpack.c.l.b16 %v1398
    %v1528 = vunpack.c.l.b16 %v1399
    %v1529 = vunpack.c.l.b16 %v1400
    %v1530 = vunpack.c.l.b16 %v1401
    %v1531 = vunpack.c.l.b16 %v1402
    %v1532 = vunpack.c.l.b16 %v1403
    %v1533 = vunpack.c.l.b16 %v1404
    %v1534 = vunpack.c.l.b16 %v1405
    %v1535 = vunpack.c.l.b16 %v1406
    %v1536 = vunpack.c.l.b16 %v1407
    %v1537 = vunpack.c.l.b16 %v1408
    %v1538 = vunpack.c.l.b16 %v1409
    %v1539 = vunpack.c.l.b16 %v1410
    %v1540 = vpack.c.b16 %v1525, %v1524
    %v1541 = vpack.c.b16 %v1527, %v1526
    %v1542 = vpack.c.b16 %v1529, %v1528
    %v1543 = vpack.c.b16 %v1531, %v1530
    %v1544 = vpack.c.b16 %v1533, %v1532
    %v1545 = vpack.c.b16 %v1535, %v1534
    %v1546 = vpack.c.b16 %v1537, %v1536
    %v1547 = vpack.c.b16 %v1539, %v1538
    %1556 = vmatpush.bf16.msra.mxu0 %v1547
    %1557 = vmatpush.bf16.msra.mxu0 %v1546
    %1558 = vmatpush.bf16.msra.mxu0 %v1545
    %1559 = vmatpush.bf16.msra.mxu0 %v1544
    %1560 = vmatpush.bf16.msra.mxu0 %v1543
    %1561 = vmatpush.bf16.msra.mxu0 %v1542
    %1562 = vmatpush.bf16.msra.mxu0 %v1541
    %1563 = vmatpush.bf16.msra.mxu0 %v1540
    %1564 = vmatmul.bf16.gmra.mxu0 %v1394
    %v1565 = vpop.f32.mrf.mxu0
    %v1566 = vadd.f32 %v1505, %v1565
    %v1567 = vpop.f32.mrf.mxu0
    %1568 = vdwg.mxu0
    %s1569 = scalar_lea.vmem %s6, 8
    %v1570 = vld [vmem:[%s1569] sm:$0xf]
    %v1572 = vsel %vm1377, %v1570, 0
    %1574 = vmatpush.bf16.msra.mxu0 0
    %1575 = vmatpush.bf16.msra.mxu0 0
    %1576 = vmatpush.bf16.msra.mxu0 0
    %1577 = vmatpush.bf16.msra.mxu0 0
    %1578 = vmatpush.bf16.msra.mxu0 0
    %1579 = vmatpush.bf16.msra.mxu0 0
    %1580 = vmatpush.bf16.msra.mxu0 %v1375
    %1581 = vmatpush.bf16.msra.mxu0 %v1374
    %1582 = vmatmul.bf16.gmra.mxu0 %v1572
    %v1583 = vpop.f32.mrf.mxu0
    %v1584 = vadd.f32 0.0, %v1583
    %v1585 = vpop.f32.mrf.mxu0
    %1586 = vdwg.mxu0
    %v1587 = vpack.c.bf16 %v1584, %v1584
    %s1588 = scalar_lea.vmem %s7, 128
    %v1589 = vld [vmem:[%s1588] sm:$0xf]
    %v1590 = vld [vmem:[%s1588 + $0x4] sm:$0xf]
    %v1591 = vld [vmem:[%s1588 + $0x8] sm:$0xf]
    %v1592 = vld [vmem:[%s1588 + $0xc] sm:$0xf]
    %v1593 = vld [vmem:[%s1588 + $0x10] sm:$0xf]
    %v1594 = vld [vmem:[%s1588 + $0x14] sm:$0xf]
    %v1595 = vld [vmem:[%s1588 + $0x18] sm:$0xf]
    %v1596 = vld [vmem:[%s1588 + $0x1c] sm:$0xf]
    %v1597 = vld [vmem:[%s1588 + $0x20] sm:$0xf]
    %v1598 = vld [vmem:[%s1588 + $0x24] sm:$0xf]
    %v1599 = vld [vmem:[%s1588 + $0x28] sm:$0xf]
    %v1600 = vld [vmem:[%s1588 + $0x2c] sm:$0xf]
    %v1601 = vld [vmem:[%s1588 + $0x30] sm:$0xf]
    %v1602 = vld [vmem:[%s1588 + $0x34] sm:$0xf]
    %v1603 = vld [vmem:[%s1588 + $0x38] sm:$0xf]
    %v1604 = vld [vmem:[%s1588 + $0x3c] sm:$0xf]
    %v1621 = vunpack.c.l.b16 %v1589
    %v1622 = vunpack.c.l.b16 %v1590
    %v1623 = vunpack.c.l.b16 %v1591
    %v1624 = vunpack.c.l.b16 %v1592
    %v1625 = vunpack.c.l.b16 %v1593
    %v1626 = vunpack.c.l.b16 %v1594
    %v1627 = vunpack.c.l.b16 %v1595
    %v1628 = vunpack.c.l.b16 %v1596
    %v1629 = vunpack.c.l.b16 %v1597
    %v1630 = vunpack.c.l.b16 %v1598
    %v1631 = vunpack.c.l.b16 %v1599
    %v1632 = vunpack.c.l.b16 %v1600
    %v1633 = vunpack.c.l.b16 %v1601
    %v1634 = vunpack.c.l.b16 %v1602
    %v1635 = vunpack.c.l.b16 %v1603
    %v1636 = vunpack.c.l.b16 %v1604
    %v1637 = vpack.c.b16 %v1622, %v1621
    %v1638 = vpack.c.b16 %v1624, %v1623
    %v1639 = vpack.c.b16 %v1626, %v1625
    %v1640 = vpack.c.b16 %v1628, %v1627
    %v1641 = vpack.c.b16 %v1630, %v1629
    %v1642 = vpack.c.b16 %v1632, %v1631
    %v1643 = vpack.c.b16 %v1634, %v1633
    %v1644 = vpack.c.b16 %v1636, %v1635
    %1653 = vmatpush.bf16.msra.mxu0 %v1644
    %1654 = vmatpush.bf16.msra.mxu0 %v1643
    %1655 = vmatpush.bf16.msra.mxu0 %v1642
    %1656 = vmatpush.bf16.msra.mxu0 %v1641
    %1657 = vmatpush.bf16.msra.mxu0 %v1640
    %1658 = vmatpush.bf16.msra.mxu0 %v1639
    %1659 = vmatpush.bf16.msra.mxu0 %v1638
    %1660 = vmatpush.bf16.msra.mxu0 %v1637
    %1661 = vmatmul.bf16.gmra.mxu0 %v1587
    %v1662 = vpop.f32.mrf.mxu0
    %v1663 = vadd.f32 0.0, %v1662
    %v1664 = vpop.f32.mrf.mxu0
    %1665 = vdwg.mxu0
    %v1666 = vadd.f32 %v1566, %v1663
    %s1667 = scalar_lea.vmem %s6, 12
    %v1668 = vld [vmem:[%s1667] sm:$0xf]
    %v1670 = vsel %vm1377, %v1668, 0
    %1672 = vmatpush.bf16.msra.mxu0 0
    %1673 = vmatpush.bf16.msra.mxu0 0
    %1674 = vmatpush.bf16.msra.mxu0 0
    %1675 = vmatpush.bf16.msra.mxu0 0
    %1676 = vmatpush.bf16.msra.mxu0 0
    %1677 = vmatpush.bf16.msra.mxu0 0
    %1678 = vmatpush.bf16.msra.mxu0 %v1375
    %1679 = vmatpush.bf16.msra.mxu0 %v1374
    %1680 = vmatmul.bf16.gmra.mxu0 %v1670
    %v1681 = vpop.f32.mrf.mxu0
    %v1682 = vadd.f32 0.0, %v1681
    %v1683 = vpop.f32.mrf.mxu0
    %1684 = vdwg.mxu0
    %v1685 = vpack.c.bf16 %v1682, %v1682
    %s1686 = scalar_lea.vmem %s7, 192
    %v1687 = vld [vmem:[%s1686] sm:$0xf]
    %v1688 = vld [vmem:[%s1686 + $0x4] sm:$0xf]
    %v1689 = vld [vmem:[%s1686 + $0x8] sm:$0xf]
    %v1690 = vld [vmem:[%s1686 + $0xc] sm:$0xf]
    %v1691 = vld [vmem:[%s1686 + $0x10] sm:$0xf]
    %v1692 = vld [vmem:[%s1686 + $0x14] sm:$0xf]
    %v1693 = vld [vmem:[%s1686 + $0x18] sm:$0xf]
    %v1694 = vld [vmem:[%s1686 + $0x1c] sm:$0xf]
    %v1695 = vld [vmem:[%s1686 + $0x20] sm:$0xf]
    %v1696 = vld [vmem:[%s1686 + $0x24] sm:$0xf]
    %v1697 = vld [vmem:[%s1686 + $0x28] sm:$0xf]
    %v1698 = vld [vmem:[%s1686 + $0x2c] sm:$0xf]
    %v1699 = vld [vmem:[%s1686 + $0x30] sm:$0xf]
    %v1700 = vld [vmem:[%s1686 + $0x34] sm:$0xf]
    %v1701 = vld [vmem:[%s1686 + $0x38] sm:$0xf]
    %v1702 = vld [vmem:[%s1686 + $0x3c] sm:$0xf]
    %v1719 = vunpack.c.l.b16 %v1687
    %v1720 = vunpack.c.l.b16 %v1688
    %v1721 = vunpack.c.l.b16 %v1689
    %v1722 = vunpack.c.l.b16 %v1690
    %v1723 = vunpack.c.l.b16 %v1691
    %v1724 = vunpack.c.l.b16 %v1692
    %v1725 = vunpack.c.l.b16 %v1693
    %v1726 = vunpack.c.l.b16 %v1694
    %v1727 = vunpack.c.l.b16 %v1695
    %v1728 = vunpack.c.l.b16 %v1696
    %v1729 = vunpack.c.l.b16 %v1697
    %v1730 = vunpack.c.l.b16 %v1698
    %v1731 = vunpack.c.l.b16 %v1699
    %v1732 = vunpack.c.l.b16 %v1700
    %v1733 = vunpack.c.l.b16 %v1701
    %v1734 = vunpack.c.l.b16 %v1702
    %v1735 = vpack.c.b16 %v1720, %v1719
    %v1736 = vpack.c.b16 %v1722, %v1721
    %v1737 = vpack.c.b16 %v1724, %v1723
    %v1738 = vpack.c.b16 %v1726, %v1725
    %v1739 = vpack.c.b16 %v1728, %v1727
    %v1740 = vpack.c.b16 %v1730, %v1729
    %v1741 = vpack.c.b16 %v1732, %v1731
    %v1742 = vpack.c.b16 %v1734, %v1733
    %1751 = vmatpush.bf16.msra.mxu0 %v1742
    %1752 = vmatpush.bf16.msra.mxu0 %v1741
    %1753 = vmatpush.bf16.msra.mxu0 %v1740
    %1754 = vmatpush.bf16.msra.mxu0 %v1739
    %1755 = vmatpush.bf16.msra.mxu0 %v1738
    %1756 = vmatpush.bf16.msra.mxu0 %v1737
    %1757 = vmatpush.bf16.msra.mxu0 %v1736
    %1758 = vmatpush.bf16.msra.mxu0 %v1735
    %1759 = vmatmul.bf16.gmra.mxu0 %v1685
    %v1760 = vpop.f32.mrf.mxu0
    %v1761 = vadd.f32 0.0, %v1760
    %v1762 = vpop.f32.mrf.mxu0
    %1763 = vdwg.mxu0
    %v1764 = vadd.f32 %v1666, %v1761
    %s1765 = scalar_lea.vmem %s6, 16
    %v1766 = vld [vmem:[%s1765] sm:$0xf]
    %v1768 = vsel %vm1377, %v1766, 0
    %1770 = vmatpush.bf16.msra.mxu0 0
    %1771 = vmatpush.bf16.msra.mxu0 0
    %1772 = vmatpush.bf16.msra.mxu0 0
    %1773 = vmatpush.bf16.msra.mxu0 0
    %1774 = vmatpush.bf16.msra.mxu0 0
    %1775 = vmatpush.bf16.msra.mxu0 0
    %1776 = vmatpush.bf16.msra.mxu0 %v1375
    %1777 = vmatpush.bf16.msra.mxu0 %v1374
    %1778 = vmatmul.bf16.gmra.mxu0 %v1768
    %v1779 = vpop.f32.mrf.mxu0
    %v1780 = vadd.f32 0.0, %v1779
    %v1781 = vpop.f32.mrf.mxu0
    %1782 = vdwg.mxu0
    %v1783 = vpack.c.bf16 %v1780, %v1780
    %s1784 = scalar_lea.vmem %s7, 256
    %v1785 = vld [vmem:[%s1784] sm:$0xf]
    %v1786 = vld [vmem:[%s1784 + $0x4] sm:$0xf]
    %v1787 = vld [vmem:[%s1784 + $0x8] sm:$0xf]
    %v1788 = vld [vmem:[%s1784 + $0xc] sm:$0xf]
    %v1789 = vld [vmem:[%s1784 + $0x10] sm:$0xf]
    %v1790 = vld [vmem:[%s1784 + $0x14] sm:$0xf]
    %v1791 = vld [vmem:[%s1784 + $0x18] sm:$0xf]
    %v1792 = vld [vmem:[%s1784 + $0x1c] sm:$0xf]
    %v1793 = vld [vmem:[%s1784 + $0x20] sm:$0xf]
    %v1794 = vld [vmem:[%s1784 + $0x24] sm:$0xf]
    %v1795 = vld [vmem:[%s1784 + $0x28] sm:$0xf]
    %v1796 = vld [vmem:[%s1784 + $0x2c] sm:$0xf]
    %v1797 = vld [vmem:[%s1784 + $0x30] sm:$0xf]
    %v1798 = vld [vmem:[%s1784 + $0x34] sm:$0xf]
    %v1799 = vld [vmem:[%s1784 + $0x38] sm:$0xf]
    %v1800 = vld [vmem:[%s1784 + $0x3c] sm:$0xf]
    %v1817 = vunpack.c.l.b16 %v1785
    %v1818 = vunpack.c.l.b16 %v1786
    %v1819 = vunpack.c.l.b16 %v1787
    %v1820 = vunpack.c.l.b16 %v1788
    %v1821 = vunpack.c.l.b16 %v1789
    %v1822 = vunpack.c.l.b16 %v1790
    %v1823 = vunpack.c.l.b16 %v1791
    %v1824 = vunpack.c.l.b16 %v1792
    %v1825 = vunpack.c.l.b16 %v1793
    %v1826 = vunpack.c.l.b16 %v1794
    %v1827 = vunpack.c.l.b16 %v1795
    %v1828 = vunpack.c.l.b16 %v1796
    %v1829 = vunpack.c.l.b16 %v1797
    %v1830 = vunpack.c.l.b16 %v1798
    %v1831 = vunpack.c.l.b16 %v1799
    %v1832 = vunpack.c.l.b16 %v1800
    %v1833 = vpack.c.b16 %v1818, %v1817
    %v1834 = vpack.c.b16 %v1820, %v1819
    %v1835 = vpack.c.b16 %v1822, %v1821
    %v1836 = vpack.c.b16 %v1824, %v1823
    %v1837 = vpack.c.b16 %v1826, %v1825
    %v1838 = vpack.c.b16 %v1828, %v1827
    %v1839 = vpack.c.b16 %v1830, %v1829
    %v1840 = vpack.c.b16 %v1832, %v1831
    %1849 = vmatpush.bf16.msra.mxu0 %v1840
    %1850 = vmatpush.bf16.msra.mxu0 %v1839
    %1851 = vmatpush.bf16.msra.mxu0 %v1838
    %1852 = vmatpush.bf16.msra.mxu0 %v1837
    %1853 = vmatpush.bf16.msra.mxu0 %v1836
    %1854 = vmatpush.bf16.msra.mxu0 %v1835
    %1855 = vmatpush.bf16.msra.mxu0 %v1834
    %1856 = vmatpush.bf16.msra.mxu0 %v1833
    %1857 = vmatmul.bf16.gmra.mxu0 %v1783
    %v1858 = vpop.f32.mrf.mxu0
    %v1859 = vadd.f32 0.0, %v1858
    %v1860 = vpop.f32.mrf.mxu0
    %1861 = vdwg.mxu0
    %v1862 = vadd.f32 %v1764, %v1859
    %s1863 = scalar_lea.vmem %s6, 20
    %v1864 = vld [vmem:[%s1863] sm:$0xf]
    %v1866 = vsel %vm1377, %v1864, 0
    %1868 = vmatpush.bf16.msra.mxu0 0
    %1869 = vmatpush.bf16.msra.mxu0 0
    %1870 = vmatpush.bf16.msra.mxu0 0
    %1871 = vmatpush.bf16.msra.mxu0 0
    %1872 = vmatpush.bf16.msra.mxu0 0
    %1873 = vmatpush.bf16.msra.mxu0 0
    %1874 = vmatpush.bf16.msra.mxu0 %v1375
    %1875 = vmatpush.bf16.msra.mxu0 %v1374
    %1876 = vmatmul.bf16.gmra.mxu0 %v1866
    %v1877 = vpop.f32.mrf.mxu0
    %v1878 = vadd.f32 0.0, %v1877
    %v1879 = vpop.f32.mrf.mxu0
    %1880 = vdwg.mxu0
    %v1881 = vpack.c.bf16 %v1878, %v1878
    %s1882 = scalar_lea.vmem %s7, 320
    %v1883 = vld [vmem:[%s1882] sm:$0xf]
    %v1884 = vld [vmem:[%s1882 + $0x4] sm:$0xf]
    %v1885 = vld [vmem:[%s1882 + $0x8] sm:$0xf]
    %v1886 = vld [vmem:[%s1882 + $0xc] sm:$0xf]
    %v1887 = vld [vmem:[%s1882 + $0x10] sm:$0xf]
    %v1888 = vld [vmem:[%s1882 + $0x14] sm:$0xf]
    %v1889 = vld [vmem:[%s1882 + $0x18] sm:$0xf]
    %v1890 = vld [vmem:[%s1882 + $0x1c] sm:$0xf]
    %v1891 = vld [vmem:[%s1882 + $0x20] sm:$0xf]
    %v1892 = vld [vmem:[%s1882 + $0x24] sm:$0xf]
    %v1893 = vld [vmem:[%s1882 + $0x28] sm:$0xf]
    %v1894 = vld [vmem:[%s1882 + $0x2c] sm:$0xf]
    %v1895 = vld [vmem:[%s1882 + $0x30] sm:$0xf]
    %v1896 = vld [vmem:[%s1882 + $0x34] sm:$0xf]
    %v1897 = vld [vmem:[%s1882 + $0x38] sm:$0xf]
    %v1898 = vld [vmem:[%s1882 + $0x3c] sm:$0xf]
    %v1915 = vunpack.c.l.b16 %v1883
    %v1916 = vunpack.c.l.b16 %v1884
    %v1917 = vunpack.c.l.b16 %v1885
    %v1918 = vunpack.c.l.b16 %v1886
    %v1919 = vunpack.c.l.b16 %v1887
    %v1920 = vunpack.c.l.b16 %v1888
    %v1921 = vunpack.c.l.b16 %v1889
    %v1922 = vunpack.c.l.b16 %v1890
    %v1923 = vunpack.c.l.b16 %v1891
    %v1924 = vunpack.c.l.b16 %v1892
    %v1925 = vunpack.c.l.b16 %v1893
    %v1926 = vunpack.c.l.b16 %v1894
    %v1927 = vunpack.c.l.b16 %v1895
    %v1928 = vunpack.c.l.b16 %v1896
    %v1929 = vunpack.c.l.b16 %v1897
    %v1930 = vunpack.c.l.b16 %v1898
    %v1931 = vpack.c.b16 %v1916, %v1915
    %v1932 = vpack.c.b16 %v1918, %v1917
    %v1933 = vpack.c.b16 %v1920, %v1919
    %v1934 = vpack.c.b16 %v1922, %v1921
    %v1935 = vpack.c.b16 %v1924, %v1923
    %v1936 = vpack.c.b16 %v1926, %v1925
    %v1937 = vpack.c.b16 %v1928, %v1927
    %v1938 = vpack.c.b16 %v1930, %v1929
    %1947 = vmatpush.bf16.msra.mxu0 %v1938
    %1948 = vmatpush.bf16.msra.mxu0 %v1937
    %1949 = vmatpush.bf16.msra.mxu0 %v1936
    %1950 = vmatpush.bf16.msra.mxu0 %v1935
    %1951 = vmatpush.bf16.msra.mxu0 %v1934
    %1952 = vmatpush.bf16.msra.mxu0 %v1933
    %1953 = vmatpush.bf16.msra.mxu0 %v1932
    %1954 = vmatpush.bf16.msra.mxu0 %v1931
    %1955 = vmatmul.bf16.gmra.mxu0 %v1881
    %v1956 = vpop.f32.mrf.mxu0
    %v1957 = vadd.f32 0.0, %v1956
    %v1958 = vpop.f32.mrf.mxu0
    %1959 = vdwg.mxu0
    %v1960 = vadd.f32 %v1862, %v1957
    %s1961 = scalar_lea.vmem %s6, 24
    %v1962 = vld [vmem:[%s1961] sm:$0xf]
    %v1964 = vsel %vm1377, %v1962, 0
    %1966 = vmatpush.bf16.msra.mxu0 0
    %1967 = vmatpush.bf16.msra.mxu0 0
    %1968 = vmatpush.bf16.msra.mxu0 0
    %1969 = vmatpush.bf16.msra.mxu0 0
    %1970 = vmatpush.bf16.msra.mxu0 0
    %1971 = vmatpush.bf16.msra.mxu0 0
    %1972 = vmatpush.bf16.msra.mxu0 %v1375
    %1973 = vmatpush.bf16.msra.mxu0 %v1374
    %1974 = vmatmul.bf16.gmra.mxu0 %v1964
    %v1975 = vpop.f32.mrf.mxu0
    %v1976 = vadd.f32 0.0, %v1975
    %v1977 = vpop.f32.mrf.mxu0
    %1978 = vdwg.mxu0
    %v1979 = vpack.c.bf16 %v1976, %v1976
    %s1980 = scalar_lea.vmem %s7, 384
    %v1981 = vld [vmem:[%s1980] sm:$0xf]
    %v1982 = vld [vmem:[%s1980 + $0x4] sm:$0xf]
    %v1983 = vld [vmem:[%s1980 + $0x8] sm:$0xf]
    %v1984 = vld [vmem:[%s1980 + $0xc] sm:$0xf]
    %v1985 = vld [vmem:[%s1980 + $0x10] sm:$0xf]
    %v1986 = vld [vmem:[%s1980 + $0x14] sm:$0xf]
    %v1987 = vld [vmem:[%s1980 + $0x18] sm:$0xf]
    %v1988 = vld [vmem:[%s1980 + $0x1c] sm:$0xf]
    %v1989 = vld [vmem:[%s1980 + $0x20] sm:$0xf]
    %v1990 = vld [vmem:[%s1980 + $0x24] sm:$0xf]
    %v1991 = vld [vmem:[%s1980 + $0x28] sm:$0xf]
    %v1992 = vld [vmem:[%s1980 + $0x2c] sm:$0xf]
    %v1993 = vld [vmem:[%s1980 + $0x30] sm:$0xf]
    %v1994 = vld [vmem:[%s1980 + $0x34] sm:$0xf]
    %v1995 = vld [vmem:[%s1980 + $0x38] sm:$0xf]
    %v1996 = vld [vmem:[%s1980 + $0x3c] sm:$0xf]
    %v2013 = vunpack.c.l.b16 %v1981
    %v2014 = vunpack.c.l.b16 %v1982
    %v2015 = vunpack.c.l.b16 %v1983
    %v2016 = vunpack.c.l.b16 %v1984
    %v2017 = vunpack.c.l.b16 %v1985
    %v2018 = vunpack.c.l.b16 %v1986
    %v2019 = vunpack.c.l.b16 %v1987
    %v2020 = vunpack.c.l.b16 %v1988
    %v2021 = vunpack.c.l.b16 %v1989
    %v2022 = vunpack.c.l.b16 %v1990
    %v2023 = vunpack.c.l.b16 %v1991
    %v2024 = vunpack.c.l.b16 %v1992
    %v2025 = vunpack.c.l.b16 %v1993
    %v2026 = vunpack.c.l.b16 %v1994
    %v2027 = vunpack.c.l.b16 %v1995
    %v2028 = vunpack.c.l.b16 %v1996
    %v2029 = vpack.c.b16 %v2014, %v2013
    %v2030 = vpack.c.b16 %v2016, %v2015
    %v2031 = vpack.c.b16 %v2018, %v2017
    %v2032 = vpack.c.b16 %v2020, %v2019
    %v2033 = vpack.c.b16 %v2022, %v2021
    %v2034 = vpack.c.b16 %v2024, %v2023
    %v2035 = vpack.c.b16 %v2026, %v2025
    %v2036 = vpack.c.b16 %v2028, %v2027
    %2045 = vmatpush.bf16.msra.mxu0 %v2036
    %2046 = vmatpush.bf16.msra.mxu0 %v2035
    %2047 = vmatpush.bf16.msra.mxu0 %v2034
    %2048 = vmatpush.bf16.msra.mxu0 %v2033
    %2049 = vmatpush.bf16.msra.mxu0 %v2032
    %2050 = vmatpush.bf16.msra.mxu0 %v2031
    %2051 = vmatpush.bf16.msra.mxu0 %v2030
    %2052 = vmatpush.bf16.msra.mxu0 %v2029
    %2053 = vmatmul.bf16.gmra.mxu0 %v1979
    %v2054 = vpop.f32.mrf.mxu0
    %v2055 = vadd.f32 0.0, %v2054
    %v2056 = vpop.f32.mrf.mxu0
    %2057 = vdwg.mxu0
    %v2058 = vadd.f32 %v1960, %v2055
    %s2059 = scalar_lea.vmem %s6, 28
    %v2060 = vld [vmem:[%s2059] sm:$0xf]
    %v2062 = vsel %vm1377, %v2060, 0
    %2064 = vmatpush.bf16.msra.mxu0 0
    %2065 = vmatpush.bf16.msra.mxu0 0
    %2066 = vmatpush.bf16.msra.mxu0 0
    %2067 = vmatpush.bf16.msra.mxu0 0
    %2068 = vmatpush.bf16.msra.mxu0 0
    %2069 = vmatpush.bf16.msra.mxu0 0
    %2070 = vmatpush.bf16.msra.mxu0 %v1375
    %2071 = vmatpush.bf16.msra.mxu0 %v1374
    %2072 = vmatmul.bf16.gmra.mxu0 %v2062
    %v2073 = vpop.f32.mrf.mxu0
    %v2074 = vadd.f32 0.0, %v2073
    %v2075 = vpop.f32.mrf.mxu0
    %2076 = vdwg.mxu0
    %v2077 = vpack.c.bf16 %v2074, %v2074
    %s2078 = scalar_lea.vmem %s7, 448
    %v2079 = vld [vmem:[%s2078] sm:$0xf]
    %v2080 = vld [vmem:[%s2078 + $0x4] sm:$0xf]
    %v2081 = vld [vmem:[%s2078 + $0x8] sm:$0xf]
    %v2082 = vld [vmem:[%s2078 + $0xc] sm:$0xf]
    %v2083 = vld [vmem:[%s2078 + $0x10] sm:$0xf]
    %v2084 = vld [vmem:[%s2078 + $0x14] sm:$0xf]
    %v2085 = vld [vmem:[%s2078 + $0x18] sm:$0xf]
    %v2086 = vld [vmem:[%s2078 + $0x1c] sm:$0xf]
    %v2087 = vld [vmem:[%s2078 + $0x20] sm:$0xf]
    %v2088 = vld [vmem:[%s2078 + $0x24] sm:$0xf]
    %v2089 = vld [vmem:[%s2078 + $0x28] sm:$0xf]
    %v2090 = vld [vmem:[%s2078 + $0x2c] sm:$0xf]
    %v2091 = vld [vmem:[%s2078 + $0x30] sm:$0xf]
    %v2092 = vld [vmem:[%s2078 + $0x34] sm:$0xf]
    %v2093 = vld [vmem:[%s2078 + $0x38] sm:$0xf]
    %v2094 = vld [vmem:[%s2078 + $0x3c] sm:$0xf]
    %v2111 = vunpack.c.l.b16 %v2079
    %v2112 = vunpack.c.l.b16 %v2080
    %v2113 = vunpack.c.l.b16 %v2081
    %v2114 = vunpack.c.l.b16 %v2082
    %v2115 = vunpack.c.l.b16 %v2083
    %v2116 = vunpack.c.l.b16 %v2084
    %v2117 = vunpack.c.l.b16 %v2085
    %v2118 = vunpack.c.l.b16 %v2086
    %v2119 = vunpack.c.l.b16 %v2087
    %v2120 = vunpack.c.l.b16 %v2088
    %v2121 = vunpack.c.l.b16 %v2089
    %v2122 = vunpack.c.l.b16 %v2090
    %v2123 = vunpack.c.l.b16 %v2091
    %v2124 = vunpack.c.l.b16 %v2092
    %v2125 = vunpack.c.l.b16 %v2093
    %v2126 = vunpack.c.l.b16 %v2094
    %v2127 = vpack.c.b16 %v2112, %v2111
    %v2128 = vpack.c.b16 %v2114, %v2113
    %v2129 = vpack.c.b16 %v2116, %v2115
    %v2130 = vpack.c.b16 %v2118, %v2117
    %v2131 = vpack.c.b16 %v2120, %v2119
    %v2132 = vpack.c.b16 %v2122, %v2121
    %v2133 = vpack.c.b16 %v2124, %v2123
    %v2134 = vpack.c.b16 %v2126, %v2125
    %2143 = vmatpush.bf16.msra.mxu0 %v2134
    %2144 = vmatpush.bf16.msra.mxu0 %v2133
    %2145 = vmatpush.bf16.msra.mxu0 %v2132
    %2146 = vmatpush.bf16.msra.mxu0 %v2131
    %2147 = vmatpush.bf16.msra.mxu0 %v2130
    %2148 = vmatpush.bf16.msra.mxu0 %v2129
    %2149 = vmatpush.bf16.msra.mxu0 %v2128
    %2150 = vmatpush.bf16.msra.mxu0 %v2127
    %2151 = vmatmul.bf16.gmra.mxu0 %v2077
    %v2152 = vpop.f32.mrf.mxu0
    %v2153 = vadd.f32 0.0, %v2152
    %v2154 = vpop.f32.mrf.mxu0
    %2155 = vdwg.mxu0
    %v2156 = vadd.f32 %v2058, %v2153
    %s2157 = scalar_lea.vmem %s6, 32
    %v2158 = vld [vmem:[%s2157] sm:$0xf]
    %v2160 = vsel %vm1377, %v2158, 0
    %2162 = vmatpush.bf16.msra.mxu0 0
    %2163 = vmatpush.bf16.msra.mxu0 0
    %2164 = vmatpush.bf16.msra.mxu0 0
    %2165 = vmatpush.bf16.msra.mxu0 0
    %2166 = vmatpush.bf16.msra.mxu0 0
    %2167 = vmatpush.bf16.msra.mxu0 0
    %2168 = vmatpush.bf16.msra.mxu0 %v1375
    %2169 = vmatpush.bf16.msra.mxu0 %v1374
    %2170 = vmatmul.bf16.gmra.mxu0 %v2160
    %v2171 = vpop.f32.mrf.mxu0
    %v2172 = vadd.f32 0.0, %v2171
    %v2173 = vpop.f32.mrf.mxu0
    %2174 = vdwg.mxu0
    %v2175 = vpack.c.bf16 %v2172, %v2172
    %s2176 = scalar_lea.vmem %s7, 512
    %v2177 = vld [vmem:[%s2176] sm:$0xf]
    %v2178 = vld [vmem:[%s2176 + $0x4] sm:$0xf]
    %v2179 = vld [vmem:[%s2176 + $0x8] sm:$0xf]
    %v2180 = vld [vmem:[%s2176 + $0xc] sm:$0xf]
    %v2181 = vld [vmem:[%s2176 + $0x10] sm:$0xf]
    %v2182 = vld [vmem:[%s2176 + $0x14] sm:$0xf]
    %v2183 = vld [vmem:[%s2176 + $0x18] sm:$0xf]
    %v2184 = vld [vmem:[%s2176 + $0x1c] sm:$0xf]
    %v2185 = vld [vmem:[%s2176 + $0x20] sm:$0xf]
    %v2186 = vld [vmem:[%s2176 + $0x24] sm:$0xf]
    %v2187 = vld [vmem:[%s2176 + $0x28] sm:$0xf]
    %v2188 = vld [vmem:[%s2176 + $0x2c] sm:$0xf]
    %v2189 = vld [vmem:[%s2176 + $0x30] sm:$0xf]
    %v2190 = vld [vmem:[%s2176 + $0x34] sm:$0xf]
    %v2191 = vld [vmem:[%s2176 + $0x38] sm:$0xf]
    %v2192 = vld [vmem:[%s2176 + $0x3c] sm:$0xf]
    %v2209 = vunpack.c.l.b16 %v2177
    %v2210 = vunpack.c.l.b16 %v2178
    %v2211 = vunpack.c.l.b16 %v2179
    %v2212 = vunpack.c.l.b16 %v2180
    %v2213 = vunpack.c.l.b16 %v2181
    %v2214 = vunpack.c.l.b16 %v2182
    %v2215 = vunpack.c.l.b16 %v2183
    %v2216 = vunpack.c.l.b16 %v2184
    %v2217 = vunpack.c.l.b16 %v2185
    %v2218 = vunpack.c.l.b16 %v2186
    %v2219 = vunpack.c.l.b16 %v2187
    %v2220 = vunpack.c.l.b16 %v2188
    %v2221 = vunpack.c.l.b16 %v2189
    %v2222 = vunpack.c.l.b16 %v2190
    %v2223 = vunpack.c.l.b16 %v2191
    %v2224 = vunpack.c.l.b16 %v2192
    %v2225 = vpack.c.b16 %v2210, %v2209
    %v2226 = vpack.c.b16 %v2212, %v2211
    %v2227 = vpack.c.b16 %v2214, %v2213
    %v2228 = vpack.c.b16 %v2216, %v2215
    %v2229 = vpack.c.b16 %v2218, %v2217
    %v2230 = vpack.c.b16 %v2220, %v2219
    %v2231 = vpack.c.b16 %v2222, %v2221
    %v2232 = vpack.c.b16 %v2224, %v2223
    %2241 = vmatpush.bf16.msra.mxu0 %v2232
    %2242 = vmatpush.bf16.msra.mxu0 %v2231
    %2243 = vmatpush.bf16.msra.mxu0 %v2230
    %2244 = vmatpush.bf16.msra.mxu0 %v2229
    %2245 = vmatpush.bf16.msra.mxu0 %v2228
    %2246 = vmatpush.bf16.msra.mxu0 %v2227
    %2247 = vmatpush.bf16.msra.mxu0 %v2226
    %2248 = vmatpush.bf16.msra.mxu0 %v2225
    %2249 = vmatmul.bf16.gmra.mxu0 %v2175
    %v2250 = vpop.f32.mrf.mxu0
    %v2251 = vadd.f32 0.0, %v2250
    %v2252 = vpop.f32.mrf.mxu0
    %2253 = vdwg.mxu0
    %v2254 = vadd.f32 %v2156, %v2251
    %v2255 = vld [vmem:[%s8] sm:$0x1]
    %v2257 = vperm.slane %v2255, 0
    %v2259 = vadd.f32 %v2254, %v2257
    %v2260 = vmax.f32 %v2259, 0.0
    %2261 = vst [vmem:[#allocation6] sm:$0xff] %v2260
    // Predicated region
    $region38: #{simple_net_forward.1} parent=1 // pred_check
      _
    $region39: #{simple_net_forward.1} parent=1 // pred_check_branch
      %2263 = sbr.rel (0) target = $region41
    $region40: #{simple_net_forward.1} parent=1 // pred_region
      %2265 = vsyncadd [#allocation3], 0
      %s2266 = sshll.u32 [#allocation2], 4
      %s2267 = int_to_ptr.vmem [resolvable:$true] %s2266
      %s2268 = sshll.u32 %s9, 4
      %s2269 = int_to_ptr.hbm [resolvable:$true] %s2268
      %2274 = dma.vmem_to_hbm [thread:$0]  %s2267, 2048, %s2269, [#allocation3], 128, 128, 8
    $region41: #{simple_net_forward.1} parent=1 // pred_fallthru
      _
    // Predicated region
    $region42: #{simple_net_forward.1} parent=1 // pred_check
      _
    $region43: #{simple_net_forward.1} parent=1 // pred_check_branch
      %2276 = sbr.rel (0) target = $region45
    $region44: #{simple_net_forward.1} parent=1 // pred_region
      %2278 = vsyncadd [#allocation5], 0
      %s2279 = sshll.u32 [#allocation4], 4
      %s2280 = int_to_ptr.vmem [resolvable:$true] %s2279
      %s2281 = sshll.u32 %s10, 4
      %s2282 = int_to_ptr.hbm [resolvable:$true] %s2281
      %2287 = dma.vmem_to_hbm [thread:$0]  %s2280, 512, %s2282, [#allocation5], 128, 128, 8
    $region45: #{simple_net_forward.1} parent=1 // pred_fallthru
      _
    // Predicated region
    $region46: #{simple_net_forward.1} parent=1 // pred_check
      _
    $region47: #{simple_net_forward.1} parent=1 // pred_check_branch
      %2289 = sbr.rel (0) target = $region49
    $region48: #{simple_net_forward.1} parent=1 // pred_region
      %2291 = vsyncadd [#allocation5], 0
      %s2293 = sshll.u32 [#allocation6], 4
      %s2294 = int_to_ptr.vmem [resolvable:$true] %s2293
      %s2295 = sshll.u32 %s11, 4
      %s2296 = int_to_ptr.hbm [resolvable:$true] %s2295
      %2298 = dma.vmem_to_hbm [thread:$0]  %s2294, 128, %s2296, [#allocation5]
    $region49: #{simple_net_forward.1} parent=1 // pred_fallthru
      _
    // Predicated region
    $region50: #{simple_net_forward.1} parent=1 // pred_check
      _
    $region51: #{simple_net_forward.1} parent=1 // pred_check_branch
      %2300 = sbr.rel (0) target = $region53
    $region52: #{simple_net_forward.1} parent=1 // pred_region
      %2302 = dma.done [#allocation3], 2048
    $region53: #{simple_net_forward.1} parent=1 // pred_fallthru
      _
    // Predicated region
    $region54: #{simple_net_forward.1} parent=1 // pred_check
      _
    $region55: #{simple_net_forward.1} parent=1 // pred_check_branch
      %2304 = sbr.rel (0) target = $region57
    $region56: #{simple_net_forward.1} parent=1 // pred_region
      %2306 = dma.done [#allocation5], 512
    $region57: #{simple_net_forward.1} parent=1 // pred_fallthru
      _
    // Predicated region
    $region58: #{simple_net_forward.1} parent=1 // pred_check
      _
    $region59: #{simple_net_forward.1} parent=1 // pred_check_branch
      %2308 = sbr.rel (0) target = $region61
    $region60: #{simple_net_forward.1} parent=1 // pred_region
      %2310 = dma.done [#allocation5], 128
    $region61: #{simple_net_forward.1} parent=1 // pred_fallthru
      _
    %2311 = vsyncpa [#allocation3], 1
    %2312 = vsyncpa [#allocation5], 1

</llo_original>
